<compile_context>
chip_gen: v7x
topology: tpu7x:2x2x1
jax: 0.10.0
libtpu: 0.0.40
codegen_flags: <defaults>
</compile_context>

<pallas_src>
import jax
import jax.numpy as jnp
from jax import lax
from jax.experimental import pallas as pl
from jax.experimental.pallas import tpu as pltpu

HIDDEN_SIZE = 50
INPUT_SIZE = 1
OUTPUT_SIZE = 1

H_PAD = 128                  # per-gate hidden padding (lane-aligned gate slots)
O_PAD = 128                  # output padding (lane-dense, unmasked output store)
B_TILE = 8                   # batch tile (f32 sublanes); one grid step per tile
GATE_ORDER = (0, 1, 3, 2)    # PyTorch (i,f,g,o) -> kernel (i,f,o,g)


# ----------------------------------------------------------------------------
# Kernel: one batch tile, full recurrence + fc on the last hidden state
# ----------------------------------------------------------------------------
def lstm_fc_kernel(x_ref, wih_ref, b_ref, whh_ref, wfc_ref, bfc_ref, out_ref):
    """
    x_ref   : (T, Bt, 1)   time-major input slice for this batch tile
    wih_ref : (1, 4*Hp)    W_ih^T, gate-reordered + zero-padded
    b_ref   : (1, 4*Hp)    b_ih + b_hh, gate-reordered + zero-padded
    whh_ref : (Hp, 4*Hp)   W_hh^T, gate-reordered + zero-padded
    wfc_ref : (Hp, Op)     W_fc^T, zero-padded
    bfc_ref : (1, Op)      b_fc, zero-padded
    out_ref : (Bt, Op)
    """
    T, Bt, _ = x_ref.shape
    Hp = whh_ref.shape[0]

    # Loop-invariant operands hoisted out of the recurrence.
    whh = whh_ref[...]
    wih = wih_ref[...]
    b = b_ref[...]

    def step(t, carry):
        h, c = carry
        # Input projection folded into the step: (Bt,1) * (1,4Hp) broadcast
        # mul-add on the VPU; independent of h, hidden under the MXU push.
        x_t = x_ref[t]                                       # (Bt, 1)
        gates = (x_t * wih + b
                 + jnp.dot(h, whh, preferred_element_type=jnp.float32))
        # Gate layout (i, f, o, g): one contiguous sigmoid + one tanh.
        sig = jax.nn.sigmoid(gates[:, :3 * Hp])
        i_g = sig[:, 0 * Hp:1 * Hp]
        f_g = sig[:, 1 * Hp:2 * Hp]
        o_g = sig[:, 2 * Hp:3 * Hp]
        g_g = jnp.tanh(gates[:, 3 * Hp:])
        c = f_g * c + i_g * g_g
        h = o_g * jnp.tanh(c)
        return h, c

    h0 = jnp.zeros((Bt, Hp), jnp.float32)
    c0 = jnp.zeros((Bt, Hp), jnp.float32)
    # Bounded unroll: serial chain, ILP saturates after a few steps.
    h_last, _ = lax.fori_loop(0, T, step, (h0, c0), unroll=min(T, 8))

    # fc applied to the last hidden state only (lane-dense (Bt, Op) store).
    out_ref[...] = (jnp.dot(h_last, wfc_ref[...],
                            preferred_element_type=jnp.float32)
                    + bfc_ref[...])


# ----------------------------------------------------------------------------
# Wrapper
# ----------------------------------------------------------------------------
def temperature_lstm_forward(x_bti, kparams):
    """x_bti: (B, T, input_size) float32 (PyTorch batch_first convention)."""
    B, T, I = x_bti.shape
    assert I == 1, "kernel is specialized to input_size == 1 (as in the spec)"
    Hp = kparams["w_hh"].shape[0]
    G = kparams["w_hh"].shape[1]          # 4 * Hp
    Op = kparams["w_fc"].shape[1]
    O = kparams["output_size"]

    Bp = ((B + B_TILE - 1) // B_TILE) * B_TILE
    n_btiles = Bp // B_TILE

    x_tbi = jnp.transpose(x_bti, (1, 0, 2)).astype(jnp.float32)   # (T, B, I)
    x_pad = jnp.pad(x_tbi, ((0, 0), (0, Bp - B), (0, 0)))         # (T, Bp, I)
    # TODO(synk): for very long T, pack x with time along lanes (Bp, T_pad) to
    # cut the 4 KiB/timestep lane-padding of the (Bt, 1) slices.

    # Explicit VMEM budget (tile-padded sizes, double-buffered, + headroom);
    # covers v5e's 16 MiB default scoped limit and stays under v7x's 64 MiB.
    def _tile_bytes(r, c):
        return (-(-r // 8) * 8) * (-(-c // 128) * 128) * 4
    vmem_bytes = 2 * (T * _tile_bytes(B_TILE, 1)
                      + 2 * _tile_bytes(1, G)
                      + _tile_bytes(Hp, G)
                      + _tile_bytes(Hp, Op)
                      + _tile_bytes(1, Op)
                      + _tile_bytes(B_TILE, Op)) + (4 << 20)
    vmem_bytes = min(vmem_bytes, 64 << 20)

    cost = pl.CostEstimate(
        flops=2 * T * Bp * Hp * G + 2 * T * Bp * G + 2 * Bp * Hp * Op,
        transcendentals=5 * T * Bp * Hp,
        bytes_accessed=4 * (int(x_pad.size) + int(kparams["w_ih"].size)
                            + int(kparams["b"].size) + int(kparams["w_hh"].size)
                            + int(kparams["w_fc"].size)
                            + int(kparams["b_fc"].size) + Bp * Op),
    )

    out_pad = pl.pallas_call(
        lstm_fc_kernel,
        out_shape=jax.ShapeDtypeStruct((Bp, Op), jnp.float32),
        grid=(n_btiles,),                                   # batch tiles
        in_specs=[
            pl.BlockSpec((T, B_TILE, I), lambda bt: (0, bt, 0)),   # x
            pl.BlockSpec((1, G), lambda bt: (0, 0)),               # W_ih^T
            pl.BlockSpec((1, G), lambda bt: (0, 0)),               # b_ih+b_hh
            pl.BlockSpec((Hp, G), lambda bt: (0, 0)),              # W_hh^T
            pl.BlockSpec((Hp, Op), lambda bt: (0, 0)),             # W_fc^T
            pl.BlockSpec((1, Op), lambda bt: (0, 0)),              # b_fc
        ],
        out_specs=pl.BlockSpec((B_TILE, Op), lambda bt: (bt, 0)),
        compiler_params=pltpu.CompilerParams(
            dimension_semantics=("parallel",),              # 2x on v7x (2 TCs)
            vmem_limit_bytes=vmem_bytes),
        cost_estimate=cost,
    )(x_pad, kparams["w_ih"], kparams["b"], kparams["w_hh"],
      kparams["w_fc"], kparams["b_fc"])

    return out_pad[:B, :O]


# ----------------------------------------------------------------------------
# Parameter construction (PyTorch-style init) + padding/reordering for kernel
# ----------------------------------------------------------------------------
def init_raw_params(key, input_size, hidden_size, output_size):
    """Deterministic init mimicking PyTorch's uniform(-1/sqrt(H), 1/sqrt(H))."""
    k = jax.random.split(key, 6)
    bound = 1.0 / jnp.sqrt(jnp.float32(hidden_size))
    return {
        "w_ih": jax.random.uniform(k[0], (4 * hidden_size, input_size),
                                   jnp.float32, -bound, bound),
        "w_hh": jax.random.uniform(k[1], (4 * hidden_size, hidden_size),
                                   jnp.float32, -bound, bound),
        "b_ih": jax.random.uniform(k[2], (4 * hidden_size,),
                                   jnp.float32, -bound, bound),
        "b_hh": jax.random.uniform(k[3], (4 * hidden_size,),
                                   jnp.float32, -bound, bound),
        "w_fc": jax.random.uniform(k[4], (output_size, hidden_size),
                                   jnp.float32, -bound, bound),
        "b_fc": jax.random.uniform(k[5], (output_size,),
                                   jnp.float32, -bound, bound),
    }


def _pad_reorder_gate_cols(w, H, Hp, order=GATE_ORDER):
    """(..., 4H) -> (..., 4*Hp): reorder gates to `order` and zero-pad each."""
    parts = []
    for k in order:
        g = w[..., k * H:(k + 1) * H]
        pad = [(0, 0)] * (w.ndim - 1) + [(0, Hp - H)]
        parts.append(jnp.pad(g, pad))
    return jnp.concatenate(parts, axis=-1)


def make_kernel_params(raw, hidden_size, output_size, h_pad=H_PAD, o_pad=O_PAD):
    H, O = hidden_size, output_size
    w_ih_T = raw["w_ih"].T                                   # (I, 4H)
    w_hh_T = raw["w_hh"].T                                   # (H, 4H)
    b = (raw["b_ih"] + raw["b_hh"]).reshape(1, 4 * H)        # (1, 4H)
    w_fc_T = raw["w_fc"].T                                   # (H, O)
    b_fc = raw["b_fc"].reshape(1, O)                         # (1, O)

    w_ih_p = _pad_reorder_gate_cols(w_ih_T, H, h_pad)        # (I, 4Hp)
    w_hh_p = _pad_reorder_gate_cols(w_hh_T, H, h_pad)        # (H, 4Hp)
    w_hh_p = jnp.pad(w_hh_p, ((0, h_pad - H), (0, 0)))       # (Hp, 4Hp)
    b_p = _pad_reorder_gate_cols(b, H, h_pad)                # (1, 4Hp)
    w_fc_p = jnp.pad(w_fc_T, ((0, h_pad - H), (0, o_pad - O)))   # (Hp, Op)
    b_fc_p = jnp.pad(b_fc, ((0, 0), (0, o_pad - O)))         # (1, Op)

    # Padding is exact-zero: padded gate lanes see zero pre-activations, so
    # padded c/h lanes provably stay 0 and zero W_hh/W_fc rows keep them
    # inert -> bit-compatible with the unpadded math.
    return {"w_ih": w_ih_p, "b": b_p, "w_hh": w_hh_p,
            "w_fc": w_fc_p, "b_fc": b_fc_p,
            "hidden_size": H, "output_size": O}


# ----------------------------------------------------------------------------
# Pure-JAX reference (unpadded weights, PyTorch gate order) for checking
# ----------------------------------------------------------------------------
def reference_forward(x_bti, raw, hidden_size):
    H = hidden_size
    w_ih_T = raw["w_ih"].T
    w_hh_T = raw["w_hh"].T
    b = (raw["b_ih"] + raw["b_hh"]).reshape(1, 4 * H)

    def step(carry, x_t):
        h, c = carry
        gates = x_t @ w_ih_T + h @ w_hh_T + b
        i_g = jax.nn.sigmoid(gates[:, 0 * H:1 * H])
        f_g = jax.nn.sigmoid(gates[:, 1 * H:2 * H])
        g_g = jnp.tanh(gates[:, 2 * H:3 * H])
        o_g = jax.nn.sigmoid(gates[:, 3 * H:4 * H])
        c = f_g * c + i_g * g_g
        h = o_g * jnp.tanh(c)
        return (h, c), None

    B = x_bti.shape[0]
    h0 = jnp.zeros((B, H), jnp.float32)
    c0 = jnp.zeros((B, H), jnp.float32)
    (h_last, _), _ = lax.scan(step, (h0, c0), jnp.transpose(x_bti, (1, 0, 2)))
    return h_last @ raw["w_fc"].T + raw["b_fc"].reshape(1, -1)


if __name__ == "__main__":
    key = jax.random.PRNGKey(0)
    kx, kx2, kp = jax.random.split(key, 3)

    raw = init_raw_params(kp, INPUT_SIZE, HIDDEN_SIZE, OUTPUT_SIZE)
    kparams = make_kernel_params(raw, HIDDEN_SIZE, OUTPUT_SIZE)

    # Small primary test: B=2, T=8 (single batch tile).
    B, T = 2, 8
    x = jax.random.normal(kx, (B, T, INPUT_SIZE), dtype=jnp.float32)
    out = jax.block_until_ready(temperature_lstm_forward(x, kparams))
    ref = reference_forward(x, raw, HIDDEN_SIZE)
    assert out.shape == (B, OUTPUT_SIZE), out.shape
    assert jnp.allclose(out, ref, atol=2e-4, rtol=2e-4), (out, ref)

    # Secondary test: B=10 -> Bp=16 exercises the batch-parallel grid axis.
    B2, T2 = 10, 8
    x2 = jax.random.normal(kx2, (B2, T2, INPUT_SIZE), dtype=jnp.float32)
    out2 = jax.block_until_ready(temperature_lstm_forward(x2, kparams))
    ref2 = reference_forward(x2, raw, HIDDEN_SIZE)
    assert out2.shape == (B2, OUTPUT_SIZE), out2.shape
    assert jnp.allclose(out2, ref2, atol=2e-4, rtol=2e-4), (out2, ref2)

    print("KERNEL_OK")
</pallas_src>

<mosaic_0001>
module attributes {stable_mosaic.version = 11 : i64} {
  func.func @lstm_fc_kernel(%arg0: i32, %arg1: memref<8x8x1xf32, #tpu.memory_space<vmem>>, %arg2: memref<1x512xf32, #tpu.memory_space<vmem>>, %arg3: memref<1x512xf32, #tpu.memory_space<vmem>>, %arg4: memref<128x512xf32, #tpu.memory_space<vmem>>, %arg5: memref<128x128xf32, #tpu.memory_space<vmem>>, %arg6: memref<1x128xf32, #tpu.memory_space<vmem>>, %arg7: memref<8x128xf32, #tpu.memory_space<vmem>>) attributes {dimension_semantics = [#tpu.dimension_semantics<parallel>], iteration_bounds = array<i64: 1>, scalar_prefetch = 0 : i64, scratch_operands = 0 : i64, tpu.core_type = #tpu.core_type<tc>, window_params = [{transform_indices = @transform_0, window_bounds = array<i64: 8, 8, 1>}, {pipeline_mode = #tpu.pipeline_mode<synchronous>, transform_indices = @transform_1, window_bounds = array<i64: 1, 512>}, {pipeline_mode = #tpu.pipeline_mode<synchronous>, transform_indices = @transform_2, window_bounds = array<i64: 1, 512>}, {pipeline_mode = #tpu.pipeline_mode<synchronous>, transform_indices = @transform_3, window_bounds = array<i64: 128, 512>}, {pipeline_mode = #tpu.pipeline_mode<synchronous>, transform_indices = @transform_4, window_bounds = array<i64: 128, 128>}, {pipeline_mode = #tpu.pipeline_mode<synchronous>, transform_indices = @transform_5, window_bounds = array<i64: 1, 128>}, {transform_indices = @transform_6, window_bounds = array<i64: 8, 128>}]} {
    %c0 = arith.constant 0 : index
    %c0_0 = arith.constant 0 : index
    %0 = vector.load %arg4[%c0, %c0_0] : memref<128x512xf32, #tpu.memory_space<vmem>>, vector<128x512xf32>
    %c0_1 = arith.constant 0 : index
    %c0_2 = arith.constant 0 : index
    %1 = vector.load %arg2[%c0_1, %c0_2] : memref<1x512xf32, #tpu.memory_space<vmem>>, vector<1x512xf32>
    %c0_3 = arith.constant 0 : index
    %c0_4 = arith.constant 0 : index
    %2 = vector.load %arg3[%c0_3, %c0_4] : memref<1x512xf32, #tpu.memory_space<vmem>>, vector<1x512xf32>
    %cst = arith.constant 0.000000e+00 : f32
    %3 = vector.broadcast %cst : f32 to vector<8x128xf32>
    %cst_5 = arith.constant 0.000000e+00 : f32
    %4 = vector.broadcast %cst_5 : f32 to vector<8x128xf32>
    %c0_i32 = arith.constant 0 : i32
    %5 = arith.index_cast %c0_i32 : i32 to index
    %c0_6 = arith.constant 0 : index
    %c0_7 = arith.constant 0 : index
    %6 = vector.load %arg1[%5, %c0_6, %c0_7] : memref<8x8x1xf32, #tpu.memory_space<vmem>>, vector<1x8x1xf32>
    %7 = vector.shape_cast %6 : vector<1x8x1xf32> to vector<8x1xf32>
    %8 = vector.broadcast %7 : vector<8x1xf32> to vector<8x512xf32>
    %9 = vector.broadcast %1 : vector<1x512xf32> to vector<8x512xf32>
    %10 = arith.mulf %8, %9 : vector<8x512xf32>
    %11 = vector.broadcast %2 : vector<1x512xf32> to vector<8x512xf32>
    %12 = arith.addf %10, %11 : vector<8x512xf32>
    %cst_8 = arith.constant dense<0.000000e+00> : vector<8x512xf32>
    %13 = tpu.matmul %3, %0, %cst_8 {dimension_numbers = #tpu.dot_dimension_numbers<[1], [0], [0], [1], [0, 0, 1, 1], [], []>} : vector<8x128xf32>, vector<128x512xf32>, vector<8x512xf32> -> vector<8x512xf32>
    %14 = arith.addf %12, %13 : vector<8x512xf32>
    %15 = vector.extract_strided_slice %14 {offsets = [0, 0], sizes = [8, 384], strides = [1, 1]} : vector<8x512xf32> to vector<8x384xf32>
    %16 = arith.negf %15 : vector<8x384xf32>
    %17 = math.exp %16 : vector<8x384xf32>
    %cst_9 = arith.constant 1.000000e+00 : f32
    %18 = vector.broadcast %cst_9 : f32 to vector<8x384xf32>
    %19 = arith.addf %18, %17 : vector<8x384xf32>
    %20 = arith.divf %18, %19 : vector<8x384xf32>
    %21 = vector.extract_strided_slice %20 {offsets = [0, 0], sizes = [8, 128], strides = [1, 1]} : vector<8x384xf32> to vector<8x128xf32>
    %22 = vector.extract_strided_slice %20 {offsets = [0, 128], sizes = [8, 128], strides = [1, 1]} : vector<8x384xf32> to vector<8x128xf32>
    %23 = vector.extract_strided_slice %20 {offsets = [0, 256], sizes = [8, 128], strides = [1, 1]} : vector<8x384xf32> to vector<8x128xf32>
    %24 = vector.extract_strided_slice %14 {offsets = [0, 384], sizes = [8, 128], strides = [1, 1]} : vector<8x512xf32> to vector<8x128xf32>
    %25 = math.tanh %24 : vector<8x128xf32>
    %26 = arith.mulf %22, %4 : vector<8x128xf32>
    %27 = arith.mulf %21, %25 : vector<8x128xf32>
    %28 = arith.addf %26, %27 : vector<8x128xf32>
    %29 = math.tanh %28 : vector<8x128xf32>
    %30 = arith.mulf %23, %29 : vector<8x128xf32>
    %c1_i32 = arith.constant 1 : i32
    %31 = arith.index_cast %c1_i32 : i32 to index
    %c0_10 = arith.constant 0 : index
    %c0_11 = arith.constant 0 : index
    %32 = vector.load %arg1[%31, %c0_10, %c0_11] : memref<8x8x1xf32, #tpu.memory_space<vmem>>, vector<1x8x1xf32>
    %33 = vector.shape_cast %32 : vector<1x8x1xf32> to vector<8x1xf32>
    %34 = vector.broadcast %33 : vector<8x1xf32> to vector<8x512xf32>
    %35 = vector.broadcast %1 : vector<1x512xf32> to vector<8x512xf32>
    %36 = arith.mulf %34, %35 : vector<8x512xf32>
    %37 = vector.broadcast %2 : vector<1x512xf32> to vector<8x512xf32>
    %38 = arith.addf %36, %37 : vector<8x512xf32>
    %cst_12 = arith.constant dense<0.000000e+00> : vector<8x512xf32>
    %39 = tpu.matmul %30, %0, %cst_12 {dimension_numbers = #tpu.dot_dimension_numbers<[1], [0], [0], [1], [0, 0, 1, 1], [], []>} : vector<8x128xf32>, vector<128x512xf32>, vector<8x512xf32> -> vector<8x512xf32>
    %40 = arith.addf %38, %39 : vector<8x512xf32>
    %41 = vector.extract_strided_slice %40 {offsets = [0, 0], sizes = [8, 384], strides = [1, 1]} : vector<8x512xf32> to vector<8x384xf32>
    %42 = arith.negf %41 : vector<8x384xf32>
    %43 = math.exp %42 : vector<8x384xf32>
    %cst_13 = arith.constant 1.000000e+00 : f32
    %44 = vector.broadcast %cst_13 : f32 to vector<8x384xf32>
    %45 = arith.addf %44, %43 : vector<8x384xf32>
    %46 = arith.divf %44, %45 : vector<8x384xf32>
    %47 = vector.extract_strided_slice %46 {offsets = [0, 0], sizes = [8, 128], strides = [1, 1]} : vector<8x384xf32> to vector<8x128xf32>
    %48 = vector.extract_strided_slice %46 {offsets = [0, 128], sizes = [8, 128], strides = [1, 1]} : vector<8x384xf32> to vector<8x128xf32>
    %49 = vector.extract_strided_slice %46 {offsets = [0, 256], sizes = [8, 128], strides = [1, 1]} : vector<8x384xf32> to vector<8x128xf32>
    %50 = vector.extract_strided_slice %40 {offsets = [0, 384], sizes = [8, 128], strides = [1, 1]} : vector<8x512xf32> to vector<8x128xf32>
    %51 = math.tanh %50 : vector<8x128xf32>
    %52 = arith.mulf %48, %28 : vector<8x128xf32>
    %53 = arith.mulf %47, %51 : vector<8x128xf32>
    %54 = arith.addf %52, %53 : vector<8x128xf32>
    %55 = math.tanh %54 : vector<8x128xf32>
    %56 = arith.mulf %49, %55 : vector<8x128xf32>
    %c2_i32 = arith.constant 2 : i32
    %57 = arith.index_cast %c2_i32 : i32 to index
    %c0_14 = arith.constant 0 : index
    %c0_15 = arith.constant 0 : index
    %58 = vector.load %arg1[%57, %c0_14, %c0_15] : memref<8x8x1xf32, #tpu.memory_space<vmem>>, vector<1x8x1xf32>
    %59 = vector.shape_cast %58 : vector<1x8x1xf32> to vector<8x1xf32>
    %60 = vector.broadcast %59 : vector<8x1xf32> to vector<8x512xf32>
    %61 = vector.broadcast %1 : vector<1x512xf32> to vector<8x512xf32>
    %62 = arith.mulf %60, %61 : vector<8x512xf32>
    %63 = vector.broadcast %2 : vector<1x512xf32> to vector<8x512xf32>
    %64 = arith.addf %62, %63 : vector<8x512xf32>
    %cst_16 = arith.constant dense<0.000000e+00> : vector<8x512xf32>
    %65 = tpu.matmul %56, %0, %cst_16 {dimension_numbers = #tpu.dot_dimension_numbers<[1], [0], [0], [1], [0, 0, 1, 1], [], []>} : vector<8x128xf32>, vector<128x512xf32>, vector<8x512xf32> -> vector<8x512xf32>
    %66 = arith.addf %64, %65 : vector<8x512xf32>
    %67 = vector.extract_strided_slice %66 {offsets = [0, 0], sizes = [8, 384], strides = [1, 1]} : vector<8x512xf32> to vector<8x384xf32>
    %68 = arith.negf %67 : vector<8x384xf32>
    %69 = math.exp %68 : vector<8x384xf32>
    %cst_17 = arith.constant 1.000000e+00 : f32
    %70 = vector.broadcast %cst_17 : f32 to vector<8x384xf32>
    %71 = arith.addf %70, %69 : vector<8x384xf32>
    %72 = arith.divf %70, %71 : vector<8x384xf32>
    %73 = vector.extract_strided_slice %72 {offsets = [0, 0], sizes = [8, 128], strides = [1, 1]} : vector<8x384xf32> to vector<8x128xf32>
    %74 = vector.extract_strided_slice %72 {offsets = [0, 128], sizes = [8, 128], strides = [1, 1]} : vector<8x384xf32> to vector<8x128xf32>
    %75 = vector.extract_strided_slice %72 {offsets = [0, 256], sizes = [8, 128], strides = [1, 1]} : vector<8x384xf32> to vector<8x128xf32>
    %76 = vector.extract_strided_slice %66 {offsets = [0, 384], sizes = [8, 128], strides = [1, 1]} : vector<8x512xf32> to vector<8x128xf32>
    %77 = math.tanh %76 : vector<8x128xf32>
    %78 = arith.mulf %74, %54 : vector<8x128xf32>
    %79 = arith.mulf %73, %77 : vector<8x128xf32>
    %80 = arith.addf %78, %79 : vector<8x128xf32>
    %81 = math.tanh %80 : vector<8x128xf32>
    %82 = arith.mulf %75, %81 : vector<8x128xf32>
    %c3_i32 = arith.constant 3 : i32
    %83 = arith.index_cast %c3_i32 : i32 to index
    %c0_18 = arith.constant 0 : index
    %c0_19 = arith.constant 0 : index
    %84 = vector.load %arg1[%83, %c0_18, %c0_19] : memref<8x8x1xf32, #tpu.memory_space<vmem>>, vector<1x8x1xf32>
    %85 = vector.shape_cast %84 : vector<1x8x1xf32> to vector<8x1xf32>
    %86 = vector.broadcast %85 : vector<8x1xf32> to vector<8x512xf32>
    %87 = vector.broadcast %1 : vector<1x512xf32> to vector<8x512xf32>
    %88 = arith.mulf %86, %87 : vector<8x512xf32>
    %89 = vector.broadcast %2 : vector<1x512xf32> to vector<8x512xf32>
    %90 = arith.addf %88, %89 : vector<8x512xf32>
    %cst_20 = arith.constant dense<0.000000e+00> : vector<8x512xf32>
    %91 = tpu.matmul %82, %0, %cst_20 {dimension_numbers = #tpu.dot_dimension_numbers<[1], [0], [0], [1], [0, 0, 1, 1], [], []>} : vector<8x128xf32>, vector<128x512xf32>, vector<8x512xf32> -> vector<8x512xf32>
    %92 = arith.addf %90, %91 : vector<8x512xf32>
    %93 = vector.extract_strided_slice %92 {offsets = [0, 0], sizes = [8, 384], strides = [1, 1]} : vector<8x512xf32> to vector<8x384xf32>
    %94 = arith.negf %93 : vector<8x384xf32>
    %95 = math.exp %94 : vector<8x384xf32>
    %cst_21 = arith.constant 1.000000e+00 : f32
    %96 = vector.broadcast %cst_21 : f32 to vector<8x384xf32>
    %97 = arith.addf %96, %95 : vector<8x384xf32>
    %98 = arith.divf %96, %97 : vector<8x384xf32>
    %99 = vector.extract_strided_slice %98 {offsets = [0, 0], sizes = [8, 128], strides = [1, 1]} : vector<8x384xf32> to vector<8x128xf32>
    %100 = vector.extract_strided_slice %98 {offsets = [0, 128], sizes = [8, 128], strides = [1, 1]} : vector<8x384xf32> to vector<8x128xf32>
    %101 = vector.extract_strided_slice %98 {offsets = [0, 256], sizes = [8, 128], strides = [1, 1]} : vector<8x384xf32> to vector<8x128xf32>
    %102 = vector.extract_strided_slice %92 {offsets = [0, 384], sizes = [8, 128], strides = [1, 1]} : vector<8x512xf32> to vector<8x128xf32>
    %103 = math.tanh %102 : vector<8x128xf32>
    %104 = arith.mulf %100, %80 : vector<8x128xf32>
    %105 = arith.mulf %99, %103 : vector<8x128xf32>
    %106 = arith.addf %104, %105 : vector<8x128xf32>
    %107 = math.tanh %106 : vector<8x128xf32>
    %108 = arith.mulf %101, %107 : vector<8x128xf32>
    %c4_i32 = arith.constant 4 : i32
    %109 = arith.index_cast %c4_i32 : i32 to index
    %c0_22 = arith.constant 0 : index
    %c0_23 = arith.constant 0 : index
    %110 = vector.load %arg1[%109, %c0_22, %c0_23] : memref<8x8x1xf32, #tpu.memory_space<vmem>>, vector<1x8x1xf32>
    %111 = vector.shape_cast %110 : vector<1x8x1xf32> to vector<8x1xf32>
    %112 = vector.broadcast %111 : vector<8x1xf32> to vector<8x512xf32>
    %113 = vector.broadcast %1 : vector<1x512xf32> to vector<8x512xf32>
    %114 = arith.mulf %112, %113 : vector<8x512xf32>
    %115 = vector.broadcast %2 : vector<1x512xf32> to vector<8x512xf32>
    %116 = arith.addf %114, %115 : vector<8x512xf32>
    %cst_24 = arith.constant dense<0.000000e+00> : vector<8x512xf32>
    %117 = tpu.matmul %108, %0, %cst_24 {dimension_numbers = #tpu.dot_dimension_numbers<[1], [0], [0], [1], [0, 0, 1, 1], [], []>} : vector<8x128xf32>, vector<128x512xf32>, vector<8x512xf32> -> vector<8x512xf32>
    %118 = arith.addf %116, %117 : vector<8x512xf32>
    %119 = vector.extract_strided_slice %118 {offsets = [0, 0], sizes = [8, 384], strides = [1, 1]} : vector<8x512xf32> to vector<8x384xf32>
    %120 = arith.negf %119 : vector<8x384xf32>
    %121 = math.exp %120 : vector<8x384xf32>
    %cst_25 = arith.constant 1.000000e+00 : f32
    %122 = vector.broadcast %cst_25 : f32 to vector<8x384xf32>
    %123 = arith.addf %122, %121 : vector<8x384xf32>
    %124 = arith.divf %122, %123 : vector<8x384xf32>
    %125 = vector.extract_strided_slice %124 {offsets = [0, 0], sizes = [8, 128], strides = [1, 1]} : vector<8x384xf32> to vector<8x128xf32>
    %126 = vector.extract_strided_slice %124 {offsets = [0, 128], sizes = [8, 128], strides = [1, 1]} : vector<8x384xf32> to vector<8x128xf32>
    %127 = vector.extract_strided_slice %124 {offsets = [0, 256], sizes = [8, 128], strides = [1, 1]} : vector<8x384xf32> to vector<8x128xf32>
    %128 = vector.extract_strided_slice %118 {offsets = [0, 384], sizes = [8, 128], strides = [1, 1]} : vector<8x512xf32> to vector<8x128xf32>
    %129 = math.tanh %128 : vector<8x128xf32>
    %130 = arith.mulf %126, %106 : vector<8x128xf32>
    %131 = arith.mulf %125, %129 : vector<8x128xf32>
    %132 = arith.addf %130, %131 : vector<8x128xf32>
    %133 = math.tanh %132 : vector<8x128xf32>
    %134 = arith.mulf %127, %133 : vector<8x128xf32>
    %c5_i32 = arith.constant 5 : i32
    %135 = arith.index_cast %c5_i32 : i32 to index
    %c0_26 = arith.constant 0 : index
    %c0_27 = arith.constant 0 : index
    %136 = vector.load %arg1[%135, %c0_26, %c0_27] : memref<8x8x1xf32, #tpu.memory_space<vmem>>, vector<1x8x1xf32>
    %137 = vector.shape_cast %136 : vector<1x8x1xf32> to vector<8x1xf32>
    %138 = vector.broadcast %137 : vector<8x1xf32> to vector<8x512xf32>
    %139 = vector.broadcast %1 : vector<1x512xf32> to vector<8x512xf32>
    %140 = arith.mulf %138, %139 : vector<8x512xf32>
    %141 = vector.broadcast %2 : vector<1x512xf32> to vector<8x512xf32>
    %142 = arith.addf %140, %141 : vector<8x512xf32>
    %cst_28 = arith.constant dense<0.000000e+00> : vector<8x512xf32>
    %143 = tpu.matmul %134, %0, %cst_28 {dimension_numbers = #tpu.dot_dimension_numbers<[1], [0], [0], [1], [0, 0, 1, 1], [], []>} : vector<8x128xf32>, vector<128x512xf32>, vector<8x512xf32> -> vector<8x512xf32>
    %144 = arith.addf %142, %143 : vector<8x512xf32>
    %145 = vector.extract_strided_slice %144 {offsets = [0, 0], sizes = [8, 384], strides = [1, 1]} : vector<8x512xf32> to vector<8x384xf32>
    %146 = arith.negf %145 : vector<8x384xf32>
    %147 = math.exp %146 : vector<8x384xf32>
    %cst_29 = arith.constant 1.000000e+00 : f32
    %148 = vector.broadcast %cst_29 : f32 to vector<8x384xf32>
    %149 = arith.addf %148, %147 : vector<8x384xf32>
    %150 = arith.divf %148, %149 : vector<8x384xf32>
    %151 = vector.extract_strided_slice %150 {offsets = [0, 0], sizes = [8, 128], strides = [1, 1]} : vector<8x384xf32> to vector<8x128xf32>
    %152 = vector.extract_strided_slice %150 {offsets = [0, 128], sizes = [8, 128], strides = [1, 1]} : vector<8x384xf32> to vector<8x128xf32>
    %153 = vector.extract_strided_slice %150 {offsets = [0, 256], sizes = [8, 128], strides = [1, 1]} : vector<8x384xf32> to vector<8x128xf32>
    %154 = vector.extract_strided_slice %144 {offsets = [0, 384], sizes = [8, 128], strides = [1, 1]} : vector<8x512xf32> to vector<8x128xf32>
    %155 = math.tanh %154 : vector<8x128xf32>
    %156 = arith.mulf %152, %132 : vector<8x128xf32>
    %157 = arith.mulf %151, %155 : vector<8x128xf32>
    %158 = arith.addf %156, %157 : vector<8x128xf32>
    %159 = math.tanh %158 : vector<8x128xf32>
    %160 = arith.mulf %153, %159 : vector<8x128xf32>
    %c6_i32 = arith.constant 6 : i32
    %161 = arith.index_cast %c6_i32 : i32 to index
    %c0_30 = arith.constant 0 : index
    %c0_31 = arith.constant 0 : index
    %162 = vector.load %arg1[%161, %c0_30, %c0_31] : memref<8x8x1xf32, #tpu.memory_space<vmem>>, vector<1x8x1xf32>
    %163 = vector.shape_cast %162 : vector<1x8x1xf32> to vector<8x1xf32>
    %164 = vector.broadcast %163 : vector<8x1xf32> to vector<8x512xf32>
    %165 = vector.broadcast %1 : vector<1x512xf32> to vector<8x512xf32>
    %166 = arith.mulf %164, %165 : vector<8x512xf32>
    %167 = vector.broadcast %2 : vector<1x512xf32> to vector<8x512xf32>
    %168 = arith.addf %166, %167 : vector<8x512xf32>
    %cst_32 = arith.constant dense<0.000000e+00> : vector<8x512xf32>
    %169 = tpu.matmul %160, %0, %cst_32 {dimension_numbers = #tpu.dot_dimension_numbers<[1], [0], [0], [1], [0, 0, 1, 1], [], []>} : vector<8x128xf32>, vector<128x512xf32>, vector<8x512xf32> -> vector<8x512xf32>
    %170 = arith.addf %168, %169 : vector<8x512xf32>
    %171 = vector.extract_strided_slice %170 {offsets = [0, 0], sizes = [8, 384], strides = [1, 1]} : vector<8x512xf32> to vector<8x384xf32>
    %172 = arith.negf %171 : vector<8x384xf32>
    %173 = math.exp %172 : vector<8x384xf32>
    %cst_33 = arith.constant 1.000000e+00 : f32
    %174 = vector.broadcast %cst_33 : f32 to vector<8x384xf32>
    %175 = arith.addf %174, %173 : vector<8x384xf32>
    %176 = arith.divf %174, %175 : vector<8x384xf32>
    %177 = vector.extract_strided_slice %176 {offsets = [0, 0], sizes = [8, 128], strides = [1, 1]} : vector<8x384xf32> to vector<8x128xf32>
    %178 = vector.extract_strided_slice %176 {offsets = [0, 128], sizes = [8, 128], strides = [1, 1]} : vector<8x384xf32> to vector<8x128xf32>
    %179 = vector.extract_strided_slice %176 {offsets = [0, 256], sizes = [8, 128], strides = [1, 1]} : vector<8x384xf32> to vector<8x128xf32>
    %180 = vector.extract_strided_slice %170 {offsets = [0, 384], sizes = [8, 128], strides = [1, 1]} : vector<8x512xf32> to vector<8x128xf32>
    %181 = math.tanh %180 : vector<8x128xf32>
    %182 = arith.mulf %178, %158 : vector<8x128xf32>
    %183 = arith.mulf %177, %181 : vector<8x128xf32>
    %184 = arith.addf %182, %183 : vector<8x128xf32>
    %185 = math.tanh %184 : vector<8x128xf32>
    %186 = arith.mulf %179, %185 : vector<8x128xf32>
    %c7_i32 = arith.constant 7 : i32
    %187 = arith.index_cast %c7_i32 : i32 to index
    %c0_34 = arith.constant 0 : index
    %c0_35 = arith.constant 0 : index
    %188 = vector.load %arg1[%187, %c0_34, %c0_35] : memref<8x8x1xf32, #tpu.memory_space<vmem>>, vector<1x8x1xf32>
    %189 = vector.shape_cast %188 : vector<1x8x1xf32> to vector<8x1xf32>
    %190 = vector.broadcast %189 : vector<8x1xf32> to vector<8x512xf32>
    %191 = vector.broadcast %1 : vector<1x512xf32> to vector<8x512xf32>
    %192 = arith.mulf %190, %191 : vector<8x512xf32>
    %193 = vector.broadcast %2 : vector<1x512xf32> to vector<8x512xf32>
    %194 = arith.addf %192, %193 : vector<8x512xf32>
    %cst_36 = arith.constant dense<0.000000e+00> : vector<8x512xf32>
    %195 = tpu.matmul %186, %0, %cst_36 {dimension_numbers = #tpu.dot_dimension_numbers<[1], [0], [0], [1], [0, 0, 1, 1], [], []>} : vector<8x128xf32>, vector<128x512xf32>, vector<8x512xf32> -> vector<8x512xf32>
    %196 = arith.addf %194, %195 : vector<8x512xf32>
    %197 = vector.extract_strided_slice %196 {offsets = [0, 0], sizes = [8, 384], strides = [1, 1]} : vector<8x512xf32> to vector<8x384xf32>
    %198 = arith.negf %197 : vector<8x384xf32>
    %199 = math.exp %198 : vector<8x384xf32>
    %cst_37 = arith.constant 1.000000e+00 : f32
    %200 = vector.broadcast %cst_37 : f32 to vector<8x384xf32>
    %201 = arith.addf %200, %199 : vector<8x384xf32>
    %202 = arith.divf %200, %201 : vector<8x384xf32>
    %203 = vector.extract_strided_slice %202 {offsets = [0, 0], sizes = [8, 128], strides = [1, 1]} : vector<8x384xf32> to vector<8x128xf32>
    %204 = vector.extract_strided_slice %202 {offsets = [0, 128], sizes = [8, 128], strides = [1, 1]} : vector<8x384xf32> to vector<8x128xf32>
    %205 = vector.extract_strided_slice %202 {offsets = [0, 256], sizes = [8, 128], strides = [1, 1]} : vector<8x384xf32> to vector<8x128xf32>
    %206 = vector.extract_strided_slice %196 {offsets = [0, 384], sizes = [8, 128], strides = [1, 1]} : vector<8x512xf32> to vector<8x128xf32>
    %207 = math.tanh %206 : vector<8x128xf32>
    %208 = arith.mulf %204, %184 : vector<8x128xf32>
    %209 = arith.mulf %203, %207 : vector<8x128xf32>
    %210 = arith.addf %208, %209 : vector<8x128xf32>
    %211 = math.tanh %210 : vector<8x128xf32>
    %212 = arith.mulf %205, %211 : vector<8x128xf32>
    %c8_i32 = arith.constant 8 : i32
    %c0_38 = arith.constant 0 : index
    %c0_39 = arith.constant 0 : index
    %213 = vector.load %arg5[%c0_38, %c0_39] : memref<128x128xf32, #tpu.memory_space<vmem>>, vector<128x128xf32>
    %cst_40 = arith.constant dense<0.000000e+00> : vector<8x128xf32>
    %214 = tpu.matmul %212, %213, %cst_40 {dimension_numbers = #tpu.dot_dimension_numbers<[1], [0], [0], [1], [0, 0, 1, 1], [], []>} : vector<8x128xf32>, vector<128x128xf32>, vector<8x128xf32> -> vector<8x128xf32>
    %c0_41 = arith.constant 0 : index
    %c0_42 = arith.constant 0 : index
    %215 = vector.load %arg6[%c0_41, %c0_42] : memref<1x128xf32, #tpu.memory_space<vmem>>, vector<1x128xf32>
    %216 = vector.broadcast %215 : vector<1x128xf32> to vector<8x128xf32>
    %217 = arith.addf %214, %216 : vector<8x128xf32>
    %c0_43 = arith.constant 0 : index
    %c0_44 = arith.constant 0 : index
    %218 = vector.load %arg7[%c0_43, %c0_44] : memref<8x128xf32, #tpu.memory_space<vmem>>, vector<8x128xf32>
    tpu.vector_store %arg7[%c0_43, %c0_44], %217 {strides = array<i32>} : memref<8x128xf32, #tpu.memory_space<vmem>>, vector<8x128xf32>,
    return
  }
  func.func @transform_0(%arg0: i32) -> (i32, i32, i32) {
    %c0_i32 = arith.constant 0 : i32
    %c0_i32_0 = arith.constant 0 : i32
    %c0_i32_1 = arith.constant 0 : i32
    return %c0_i32, %arg0, %c0_i32_0 : i32, i32, i32
  }
  func.func @transform_1(%arg0: i32) -> (i32, i32) {
    %c0_i32 = arith.constant 0 : i32
    %c0_i32_0 = arith.constant 0 : i32
    %c0_i32_1 = arith.constant 0 : i32
    return %c0_i32, %c0_i32_0 : i32, i32
  }
  func.func @transform_2(%arg0: i32) -> (i32, i32) {
    %c0_i32 = arith.constant 0 : i32
    %c0_i32_0 = arith.constant 0 : i32
    %c0_i32_1 = arith.constant 0 : i32
    return %c0_i32, %c0_i32_0 : i32, i32
  }
  func.func @transform_3(%arg0: i32) -> (i32, i32) {
    %c0_i32 = arith.constant 0 : i32
    %c0_i32_0 = arith.constant 0 : i32
    %c0_i32_1 = arith.constant 0 : i32
    return %c0_i32, %c0_i32_0 : i32, i32
  }
  func.func @transform_4(%arg0: i32) -> (i32, i32) {
    %c0_i32 = arith.constant 0 : i32
    %c0_i32_0 = arith.constant 0 : i32
    %c0_i32_1 = arith.constant 0 : i32
    return %c0_i32, %c0_i32_0 : i32, i32
  }
  func.func @transform_5(%arg0: i32) -> (i32, i32) {
    %c0_i32 = arith.constant 0 : i32
    %c0_i32_0 = arith.constant 0 : i32
    %c0_i32_1 = arith.constant 0 : i32
    return %c0_i32, %c0_i32_0 : i32, i32
  }
  func.func @transform_6(%arg0: i32) -> (i32, i32) {
    %c0_i32 = arith.constant 0 : i32
    %c0_i32_0 = arith.constant 0 : i32
    return %arg0, %c0_i32 : i32, i32
  }
}

</mosaic_0001>

<llo_original>
// kernel: tpu_custom_call.1
$region0: #{tpu_custom_call.1}
  #allocation0 [shape = 'u32[]', space=smem, size = 0x4, offset = 0x4, fixed_abs, tag = 'smem constant byte address 0x4 - core index']
  #allocation1 [shape = 'u32[144,128]{1,0:T(1,128)}', space=vmem, size = 0x12000, scoped, tag = 'internal scratch']
  %s0 = inlined_call_operand.vmem [shape: f32[8,8,1], index: 0, kind: input, shape index: {}]
  %s1 = inlined_call_operand.vmem [shape: f32[1,512], index: 1, kind: input, shape index: {}]
  %s2 = inlined_call_operand.vmem [shape: f32[1,512], index: 2, kind: input, shape index: {}]
  %s3 = inlined_call_operand.hbm [shape: f32[128,512], index: 3, kind: input, shape index: {}]
  %s4 = inlined_call_operand.hbm [shape: f32[128,128], index: 4, kind: input, shape index: {}]
  %s5 = inlined_call_operand.vmem [shape: f32[1,128], index: 5, kind: input, shape index: {}]
  %s6 = inlined_call_operand.hbm [shape: f32[8,128], index: 6, kind: output, shape index: {}]
  %s7 = sld [smem:[#allocation0]]
  $region42: #{tpu_custom_call.1} parent=0
    _
  %s9 = ssub.s32 1, %s7
  %s10 = scalar_select 0, %s9, %s7
  $region1: #{tpu_custom_call.1} parent=0
    #allocation2 [shape = 'u8[262144]{0}', space=vmem, size = 0x40000, scoped, tag = 'input window, operand 3, single buffered']
    #allocation3 [shape = 's32[1]{0}', space=sflag, size = 0x4, scoped, tag = 'scoped memory for tpu_custom_call.1']
    #allocation4 [shape = 's32[1]{0}', space=sflag, size = 0x4, scoped, tag = 'scoped memory for tpu_custom_call.1']
    #allocation5 [shape = 'u8[65536]{0}', space=vmem, size = 0x10000, scoped, tag = 'input window, operand 4, single buffered']
    #allocation6 [shape = 's32[1]{0}', space=sflag, size = 0x4, scoped, tag = 'scoped memory for tpu_custom_call.1']
    #allocation7 [shape = 'u8[4096]{0}', space=vmem, size = 0x1000, scoped, tag = 'output window, operand 0, single buffered']
    %11 = vsyncpa [#allocation3], 0
    %12 = vsyncpa [#allocation6], 0
    %13 = vsyncpa [#allocation4], 0
    // Predicated region
    $region2: #{tpu_custom_call.1} parent=1 // pred_check
      _
    $region3: #{tpu_custom_call.1} parent=1 // pred_check_branch
      %15 = sbr.rel (0) target = $region5
    $region4: #{tpu_custom_call.1} parent=1 // pred_region
      _
    $region5: #{tpu_custom_call.1} parent=1 // pred_fallthru
      _
    // Predicated region
    $region6: #{tpu_custom_call.1} parent=1 // pred_check
      _
    $region7: #{tpu_custom_call.1} parent=1 // pred_check_branch
      %17 = sbr.rel (0) target = $region9
    $region8: #{tpu_custom_call.1} parent=1 // pred_region
      _
    $region9: #{tpu_custom_call.1} parent=1 // pred_fallthru
      _
    // Predicated region
    $region10: #{tpu_custom_call.1} parent=1 // pred_check
      _
    $region11: #{tpu_custom_call.1} parent=1 // pred_check_branch
      %19 = sbr.rel (0) target = $region13
    $region12: #{tpu_custom_call.1} parent=1 // pred_region
      _
    $region13: #{tpu_custom_call.1} parent=1 // pred_fallthru
      _
    // Predicated region
    $region14: #{tpu_custom_call.1} parent=1 // pred_check
      _
    $region15: #{tpu_custom_call.1} parent=1 // pred_check_branch
      %21 = sbr.rel (0) target = $region17
    $region16: #{tpu_custom_call.1} parent=1 // pred_region
      %s23 = ssub.s32 8192, 8192
      %24 = vsyncadd [#allocation3], %s23
      %s25 = sshll.u32 [#allocation2], 4
      %s26 = int_to_ptr.vmem [resolvable:$true] %s25
      %31 = dma.hbm_to_vmem [thread:$0]  %s3, 8192, %s26, [#allocation3], 512, 512, 32
    $region17: #{tpu_custom_call.1} parent=1 // pred_fallthru
      _
    // Predicated region
    $region18: #{tpu_custom_call.1} parent=1 // pred_check
      _
    $region19: #{tpu_custom_call.1} parent=1 // pred_check_branch
      %33 = sbr.rel (0) target = $region21
    $region20: #{tpu_custom_call.1} parent=1 // pred_region
      %s35 = ssub.s32 2048, 2048
      %36 = vsyncadd [#allocation6], %s35
      %s37 = sshll.u32 [#allocation5], 4
      %s38 = int_to_ptr.vmem [resolvable:$true] %s37
      %43 = dma.hbm_to_vmem [thread:$0]  %s4, 2048, %s38, [#allocation6], 128, 128, 8
    $region21: #{tpu_custom_call.1} parent=1 // pred_fallthru
      _
    // Predicated region
    $region22: #{tpu_custom_call.1} parent=1 // pred_check
      _
    $region23: #{tpu_custom_call.1} parent=1 // pred_check_branch
      %45 = sbr.rel (0) target = $region25
    $region24: #{tpu_custom_call.1} parent=1 // pred_region
      _
    $region25: #{tpu_custom_call.1} parent=1 // pred_fallthru
      _
    // Predicated region
    $region26: #{tpu_custom_call.1} parent=1 // pred_check
      _
    $region27: #{tpu_custom_call.1} parent=1 // pred_check_branch
      %47 = sbr.rel (0) target = $region29
    $region28: #{tpu_custom_call.1} parent=1 // pred_region
      %48 = dma.done [#allocation3], 8192
    $region29: #{tpu_custom_call.1} parent=1 // pred_fallthru
      _
    // Predicated region
    $region30: #{tpu_custom_call.1} parent=1 // pred_check
      _
    $region31: #{tpu_custom_call.1} parent=1 // pred_check_branch
      %50 = sbr.rel (0) target = $region33
    $region32: #{tpu_custom_call.1} parent=1 // pred_region
      %51 = dma.done [#allocation6], 2048
    $region33: #{tpu_custom_call.1} parent=1 // pred_fallthru
      _
    %v52 = vld [vmem:[#allocation2] sm:$0xff]
    %v53 = vld [vmem:[#allocation2 + $0x8] sm:$0xff]
    %v54 = vld [vmem:[#allocation2 + $0x10] sm:$0xff]
    %v55 = vld [vmem:[#allocation2 + $0x18] sm:$0xff]
    %v56 = vld [vmem:[#allocation2 + $0x20] sm:$0xff]
    %v57 = vld [vmem:[#allocation2 + $0x28] sm:$0xff]
    %v58 = vld [vmem:[#allocation2 + $0x30] sm:$0xff]
    %v59 = vld [vmem:[#allocation2 + $0x38] sm:$0xff]
    %v60 = vld [vmem:[#allocation2 + $0x40] sm:$0xff]
    %v61 = vld [vmem:[#allocation2 + $0x48] sm:$0xff]
    %v62 = vld [vmem:[#allocation2 + $0x50] sm:$0xff]
    %v63 = vld [vmem:[#allocation2 + $0x58] sm:$0xff]
    %v64 = vld [vmem:[#allocation2 + $0x60] sm:$0xff]
    %v65 = vld [vmem:[#allocation2 + $0x68] sm:$0xff]
    %v66 = vld [vmem:[#allocation2 + $0x70] sm:$0xff]
    %v67 = vld [vmem:[#allocation2 + $0x78] sm:$0xff]
    %v68 = vld [vmem:[#allocation2 + $0x80] sm:$0xff]
    %v69 = vld [vmem:[#allocation2 + $0x88] sm:$0xff]
    %v70 = vld [vmem:[#allocation2 + $0x90] sm:$0xff]
    %v71 = vld [vmem:[#allocation2 + $0x98] sm:$0xff]
    %v72 = vld [vmem:[#allocation2 + $0xa0] sm:$0xff]
    %v73 = vld [vmem:[#allocation2 + $0xa8] sm:$0xff]
    %v74 = vld [vmem:[#allocation2 + $0xb0] sm:$0xff]
    %v75 = vld [vmem:[#allocation2 + $0xb8] sm:$0xff]
    %v76 = vld [vmem:[#allocation2 + $0xc0] sm:$0xff]
    %v77 = vld [vmem:[#allocation2 + $0xc8] sm:$0xff]
    %v78 = vld [vmem:[#allocation2 + $0xd0] sm:$0xff]
    %v79 = vld [vmem:[#allocation2 + $0xd8] sm:$0xff]
    %v80 = vld [vmem:[#allocation2 + $0xe0] sm:$0xff]
    %v81 = vld [vmem:[#allocation2 + $0xe8] sm:$0xff]
    %v82 = vld [vmem:[#allocation2 + $0xf0] sm:$0xff]
    %v83 = vld [vmem:[#allocation2 + $0xf8] sm:$0xff]
    %v84 = vld [vmem:[#allocation2 + $0x100] sm:$0xff]
    %v85 = vld [vmem:[#allocation2 + $0x108] sm:$0xff]
    %v86 = vld [vmem:[#allocation2 + $0x110] sm:$0xff]
    %v87 = vld [vmem:[#allocation2 + $0x118] sm:$0xff]
    %v88 = vld [vmem:[#allocation2 + $0x120] sm:$0xff]
    %v89 = vld [vmem:[#allocation2 + $0x128] sm:$0xff]
    %v90 = vld [vmem:[#allocation2 + $0x130] sm:$0xff]
    %v91 = vld [vmem:[#allocation2 + $0x138] sm:$0xff]
    %v92 = vld [vmem:[#allocation2 + $0x140] sm:$0xff]
    %v93 = vld [vmem:[#allocation2 + $0x148] sm:$0xff]
    %v94 = vld [vmem:[#allocation2 + $0x150] sm:$0xff]
    %v95 = vld [vmem:[#allocation2 + $0x158] sm:$0xff]
    %v96 = vld [vmem:[#allocation2 + $0x160] sm:$0xff]
    %v97 = vld [vmem:[#allocation2 + $0x168] sm:$0xff]
    %v98 = vld [vmem:[#allocation2 + $0x170] sm:$0xff]
    %v99 = vld [vmem:[#allocation2 + $0x178] sm:$0xff]
    %v100 = vld [vmem:[#allocation2 + $0x180] sm:$0xff]
    %v101 = vld [vmem:[#allocation2 + $0x188] sm:$0xff]
    %v102 = vld [vmem:[#allocation2 + $0x190] sm:$0xff]
    %v103 = vld [vmem:[#allocation2 + $0x198] sm:$0xff]
    %v104 = vld [vmem:[#allocation2 + $0x1a0] sm:$0xff]
    %v105 = vld [vmem:[#allocation2 + $0x1a8] sm:$0xff]
    %v106 = vld [vmem:[#allocation2 + $0x1b0] sm:$0xff]
    %v107 = vld [vmem:[#allocation2 + $0x1b8] sm:$0xff]
    %v108 = vld [vmem:[#allocation2 + $0x1c0] sm:$0xff]
    %v109 = vld [vmem:[#allocation2 + $0x1c8] sm:$0xff]
    %v110 = vld [vmem:[#allocation2 + $0x1d0] sm:$0xff]
    %v111 = vld [vmem:[#allocation2 + $0x1d8] sm:$0xff]
    %v112 = vld [vmem:[#allocation2 + $0x1e0] sm:$0xff]
    %v113 = vld [vmem:[#allocation2 + $0x1e8] sm:$0xff]
    %v114 = vld [vmem:[#allocation2 + $0x1f0] sm:$0xff]
    %v115 = vld [vmem:[#allocation2 + $0x1f8] sm:$0xff]
    %v116 = vld [vmem:[%s1] sm:$0xf]
    %v117 = vld [vmem:[%s2] sm:$0xf]
    %v118 = vld [vmem:[%s0] sm:$0xff]
    %120 = vset.pattern.permute.xlu0 0
    %121 = vperm.xlu0 %120, %v118
    %v122 = vpop.permute.xlu0 %121
    %v125 = vlaneseq
    %v126 = vshrl.u32 %v125, 7
    %v127 = vsub.s32 0, %v126
    %v128 = vrot.slane %v116, %v127
    %v129 = vlaneseq
    %v130 = vshrl.u32 %v129, 7
    %v131 = vsub.s32 1, %v130
    %v132 = vrot.slane %v116, %v131
    %v133 = vlaneseq
    %v134 = vshrl.u32 %v133, 7
    %v135 = vsub.s32 2, %v134
    %v136 = vrot.slane %v116, %v135
    %v137 = vlaneseq
    %v138 = vshrl.u32 %v137, 7
    %v139 = vsub.s32 3, %v138
    %v140 = vrot.slane %v116, %v139
    %v145 = vmul.f32 %v122, %v128
    %v146 = vmul.f32 %v122, %v132
    %v147 = vmul.f32 %v122, %v136
    %v148 = vmul.f32 %v122, %v140
    %v150 = vlaneseq
    %v151 = vshrl.u32 %v150, 7
    %v152 = vsub.s32 0, %v151
    %v153 = vrot.slane %v117, %v152
    %v154 = vlaneseq
    %v155 = vshrl.u32 %v154, 7
    %v156 = vsub.s32 1, %v155
    %v157 = vrot.slane %v117, %v156
    %v158 = vlaneseq
    %v159 = vshrl.u32 %v158, 7
    %v160 = vsub.s32 2, %v159
    %v161 = vrot.slane %v117, %v160
    %v162 = vlaneseq
    %v163 = vshrl.u32 %v162, 7
    %v164 = vsub.s32 3, %v163
    %v165 = vrot.slane %v117, %v164
    %v170 = vadd.f32 %v145, %v153
    %v171 = vadd.f32 %v146, %v157
    %v172 = vadd.f32 %v147, %v161
    %v173 = vadd.f32 %v148, %v165
    %174 = vmatprep.subr.mxu0 %v53
    %175 = vmatpush1.msra.mxu0 %v52
    %176 = vmatprep.subr.mxu0 %v57
    %177 = vmatpush1.msra.mxu0 %v56
    %178 = vmatprep.subr.mxu0 %v61
    %179 = vmatpush1.msra.mxu0 %v60
    %180 = vmatprep.subr.mxu0 %v65
    %181 = vmatpush1.msra.mxu0 %v64
    %182 = vmatprep.subr.mxu0 %v69
    %183 = vmatpush1.msra.mxu0 %v68
    %184 = vmatprep.subr.mxu0 %v73
    %185 = vmatpush1.msra.mxu0 %v72
    %186 = vmatprep.subr.mxu0 %v77
    %187 = vmatpush1.msra.mxu0 %v76
    %188 = vmatprep.subr.mxu0 %v81
    %189 = vmatpush1.msra.mxu0 %v80
    %190 = vmatprep.subr.mxu0 %v85
    %191 = vmatpush1.msra.mxu0 %v84
    %192 = vmatprep.subr.mxu0 %v89
    %193 = vmatpush1.msra.mxu0 %v88
    %194 = vmatprep.subr.mxu0 %v93
    %195 = vmatpush1.msra.mxu0 %v92
    %196 = vmatprep.subr.mxu0 %v97
    %197 = vmatpush1.msra.mxu0 %v96
    %198 = vmatprep.subr.mxu0 %v101
    %199 = vmatpush1.msra.mxu0 %v100
    %200 = vmatprep.subr.mxu0 %v105
    %201 = vmatpush1.msra.mxu0 %v104
    %202 = vmatprep.subr.mxu0 %v109
    %203 = vmatpush1.msra.mxu0 %v108
    %204 = vmatprep.subr.mxu0 %v113
    %205 = vmatpush1.msra.mxu0 %v112
    %206 = vmatprep.subr.mxu0 0.0
    %207 = vmatpush1.msra.mxu0 0.0
    %208 = vmatprep.subr.mxu0 0.0
    %209 = vmatpush1.msra.mxu0 0.0
    %210 = vmatprep.subr.mxu0 0.0
    %211 = vmatpush1.msra.mxu0 0.0
    %212 = vmatprep.subr.mxu0 0.0
    %213 = vmatpush1.msra.mxu0 0.0
    %214 = vmatprep.subr.mxu0 0.0
    %215 = vmatpush1.msra.mxu0 0.0
    %216 = vmatprep.subr.mxu0 0.0
    %217 = vmatpush1.msra.mxu0 0.0
    %218 = vmatprep.subr.mxu0 0.0
    %219 = vmatpush1.msra.mxu0 0.0
    %220 = vmatprep.subr.mxu0 0.0
    %221 = vmatpush1.msra.mxu0 0.0
    %222 = vmatprep.subr.mxu0 0.0
    %223 = vmatpush1.msra.mxu0 0.0
    %224 = vmatprep.subr.mxu0 0.0
    %225 = vmatpush1.msra.mxu0 0.0
    %226 = vmatprep.subr.mxu0 0.0
    %227 = vmatpush1.msra.mxu0 0.0
    %228 = vmatprep.subr.mxu0 0.0
    %229 = vmatpush1.msra.mxu0 0.0
    %230 = vmatprep.subr.mxu0 0.0
    %231 = vmatpush1.msra.mxu0 0.0
    %232 = vmatprep.subr.mxu0 0.0
    %233 = vmatpush1.msra.mxu0 0.0
    %234 = vmatprep.subr.mxu0 0.0
    %235 = vmatpush1.msra.mxu0 0.0
    %236 = vmatprep.subr.mxu0 0.0
    %237 = vmatpush1.msra.mxu0 0.0
    %238 = vmatprep.mubr.f32.mxu0 0.0
    %239 = vmatmul.mubr.f32.gmra.mrb[0].mxu0 0.0
    %v240 = vpop.f32.mrb[0].mxu0
    %v241 = vadd.f32 0.0, %v240
    %v242 = vpop.f32.mrb[0].mxu0
    %v243 = vadd.f32 0.0, %v242
    %244 = vdwg.mxu0
    %245 = vmatprep.subr.mxu0 %v55
    %246 = vmatpush1.msra.mxu0 %v54
    %247 = vmatprep.subr.mxu0 %v59
    %248 = vmatpush1.msra.mxu0 %v58
    %249 = vmatprep.subr.mxu0 %v63
    %250 = vmatpush1.msra.mxu0 %v62
    %251 = vmatprep.subr.mxu0 %v67
    %252 = vmatpush1.msra.mxu0 %v66
    %253 = vmatprep.subr.mxu0 %v71
    %254 = vmatpush1.msra.mxu0 %v70
    %255 = vmatprep.subr.mxu0 %v75
    %256 = vmatpush1.msra.mxu0 %v74
    %257 = vmatprep.subr.mxu0 %v79
    %258 = vmatpush1.msra.mxu0 %v78
    %259 = vmatprep.subr.mxu0 %v83
    %260 = vmatpush1.msra.mxu0 %v82
    %261 = vmatprep.subr.mxu0 %v87
    %262 = vmatpush1.msra.mxu0 %v86
    %263 = vmatprep.subr.mxu0 %v91
    %264 = vmatpush1.msra.mxu0 %v90
    %265 = vmatprep.subr.mxu0 %v95
    %266 = vmatpush1.msra.mxu0 %v94
    %267 = vmatprep.subr.mxu0 %v99
    %268 = vmatpush1.msra.mxu0 %v98
    %269 = vmatprep.subr.mxu0 %v103
    %270 = vmatpush1.msra.mxu0 %v102
    %271 = vmatprep.subr.mxu0 %v107
    %272 = vmatpush1.msra.mxu0 %v106
    %273 = vmatprep.subr.mxu0 %v111
    %274 = vmatpush1.msra.mxu0 %v110
    %275 = vmatprep.subr.mxu0 %v115
    %276 = vmatpush1.msra.mxu0 %v114
    %277 = vmatprep.subr.mxu0 0.0
    %278 = vmatpush1.msra.mxu0 0.0
    %279 = vmatprep.subr.mxu0 0.0
    %280 = vmatpush1.msra.mxu0 0.0
    %281 = vmatprep.subr.mxu0 0.0
    %282 = vmatpush1.msra.mxu0 0.0
    %283 = vmatprep.subr.mxu0 0.0
    %284 = vmatpush1.msra.mxu0 0.0
    %285 = vmatprep.subr.mxu0 0.0
    %286 = vmatpush1.msra.mxu0 0.0
    %287 = vmatprep.subr.mxu0 0.0
    %288 = vmatpush1.msra.mxu0 0.0
    %289 = vmatprep.subr.mxu0 0.0
    %290 = vmatpush1.msra.mxu0 0.0
    %291 = vmatprep.subr.mxu0 0.0
    %292 = vmatpush1.msra.mxu0 0.0
    %293 = vmatprep.subr.mxu0 0.0
    %294 = vmatpush1.msra.mxu0 0.0
    %295 = vmatprep.subr.mxu0 0.0
    %296 = vmatpush1.msra.mxu0 0.0
    %297 = vmatprep.subr.mxu0 0.0
    %298 = vmatpush1.msra.mxu0 0.0
    %299 = vmatprep.subr.mxu0 0.0
    %300 = vmatpush1.msra.mxu0 0.0
    %301 = vmatprep.subr.mxu0 0.0
    %302 = vmatpush1.msra.mxu0 0.0
    %303 = vmatprep.subr.mxu0 0.0
    %304 = vmatpush1.msra.mxu0 0.0
    %305 = vmatprep.subr.mxu0 0.0
    %306 = vmatpush1.msra.mxu0 0.0
    %307 = vmatprep.subr.mxu0 0.0
    %308 = vmatpush1.msra.mxu0 0.0
    %309 = vmatprep.mubr.f32.mxu0 0.0
    %310 = vmatmul.mubr.f32.gmra.mrb[0].mxu0 0.0
    %v311 = vpop.f32.mrb[0].mxu0
    %v312 = vadd.f32 0.0, %v311
    %v313 = vpop.f32.mrb[0].mxu0
    %v314 = vadd.f32 0.0, %v313
    %315 = vdwg.mxu0
    %v316 = vadd.f32 %v170, %v241
    %v317 = vadd.f32 %v171, %v243
    %v318 = vadd.f32 %v172, %v312
    %v319 = vadd.f32 %v173, %v314
    %v320 = vxor.u32 %v316, 2147483648
    %v321 = vxor.u32 %v317, 2147483648
    %v322 = vxor.u32 %v318, 2147483648
    %v323 = vmul.f32 %v320, 1.442695
    %v324 = vpow.pop %v323
    %v325 = vmul.f32 %v321, 1.442695
    %v326 = vpow.pop %v325
    %v327 = vmul.f32 %v322, 1.442695
    %v328 = vpow.pop %v327
    %v329 = vadd.f32 %v324, 1.0
    %v330 = vadd.f32 %v326, 1.0
    %v331 = vadd.f32 %v328, 1.0
    %v332 = vrcp.pop %v329
    %v333 = vmul.f32 1.0, %v332
    %v334 = vrcp.pop %v330
    %v335 = vmul.f32 1.0, %v334
    %v336 = vrcp.pop %v331
    %v337 = vmul.f32 1.0, %v336
    %v338 = vtanh.pop %v319
    %v339 = vmul.f32 %v335, 0.0
    %v340 = vmul.f32 %v333, %v338
    %v341 = vadd.f32 %v339, %v340
    %v342 = vtanh.pop %v341
    %v343 = vmul.f32 %v337, %v342
    %s344 = scalar_lea.vmem %s0, 8
    %v345 = vld [vmem:[%s344] sm:$0xff]
    %347 = vset.pattern.permute.xlu0 0
    %348 = vperm.xlu0 %347, %v345
    %v349 = vpop.permute.xlu0 %348
    %v351 = vmul.f32 %v349, %v128
    %v352 = vmul.f32 %v349, %v132
    %v353 = vmul.f32 %v349, %v136
    %v354 = vmul.f32 %v349, %v140
    %v355 = vadd.f32 %v351, %v153
    %v356 = vadd.f32 %v352, %v157
    %v357 = vadd.f32 %v353, %v161
    %v358 = vadd.f32 %v354, %v165
    %359 = vmatprep.subr.mxu0 %v53
    %360 = vmatpush1.msra.mxu0 %v52
    %361 = vmatprep.subr.mxu0 %v57
    %362 = vmatpush1.msra.mxu0 %v56
    %363 = vmatprep.subr.mxu0 %v61
    %364 = vmatpush1.msra.mxu0 %v60
    %365 = vmatprep.subr.mxu0 %v65
    %366 = vmatpush1.msra.mxu0 %v64
    %367 = vmatprep.subr.mxu0 %v69
    %368 = vmatpush1.msra.mxu0 %v68
    %369 = vmatprep.subr.mxu0 %v73
    %370 = vmatpush1.msra.mxu0 %v72
    %371 = vmatprep.subr.mxu0 %v77
    %372 = vmatpush1.msra.mxu0 %v76
    %373 = vmatprep.subr.mxu0 %v81
    %374 = vmatpush1.msra.mxu0 %v80
    %375 = vmatprep.subr.mxu0 %v85
    %376 = vmatpush1.msra.mxu0 %v84
    %377 = vmatprep.subr.mxu0 %v89
    %378 = vmatpush1.msra.mxu0 %v88
    %379 = vmatprep.subr.mxu0 %v93
    %380 = vmatpush1.msra.mxu0 %v92
    %381 = vmatprep.subr.mxu0 %v97
    %382 = vmatpush1.msra.mxu0 %v96
    %383 = vmatprep.subr.mxu0 %v101
    %384 = vmatpush1.msra.mxu0 %v100
    %385 = vmatprep.subr.mxu0 %v105
    %386 = vmatpush1.msra.mxu0 %v104
    %387 = vmatprep.subr.mxu0 %v109
    %388 = vmatpush1.msra.mxu0 %v108
    %389 = vmatprep.subr.mxu0 %v113
    %390 = vmatpush1.msra.mxu0 %v112
    %391 = vmatprep.subr.mxu0 0.0
    %392 = vmatpush1.msra.mxu0 0.0
    %393 = vmatprep.subr.mxu0 0.0
    %394 = vmatpush1.msra.mxu0 0.0
    %395 = vmatprep.subr.mxu0 0.0
    %396 = vmatpush1.msra.mxu0 0.0
    %397 = vmatprep.subr.mxu0 0.0
    %398 = vmatpush1.msra.mxu0 0.0
    %399 = vmatprep.subr.mxu0 0.0
    %400 = vmatpush1.msra.mxu0 0.0
    %401 = vmatprep.subr.mxu0 0.0
    %402 = vmatpush1.msra.mxu0 0.0
    %403 = vmatprep.subr.mxu0 0.0
    %404 = vmatpush1.msra.mxu0 0.0
    %405 = vmatprep.subr.mxu0 0.0
    %406 = vmatpush1.msra.mxu0 0.0
    %407 = vmatprep.subr.mxu0 0.0
    %408 = vmatpush1.msra.mxu0 0.0
    %409 = vmatprep.subr.mxu0 0.0
    %410 = vmatpush1.msra.mxu0 0.0
    %411 = vmatprep.subr.mxu0 0.0
    %412 = vmatpush1.msra.mxu0 0.0
    %413 = vmatprep.subr.mxu0 0.0
    %414 = vmatpush1.msra.mxu0 0.0
    %415 = vmatprep.subr.mxu0 0.0
    %416 = vmatpush1.msra.mxu0 0.0
    %417 = vmatprep.subr.mxu0 0.0
    %418 = vmatpush1.msra.mxu0 0.0
    %419 = vmatprep.subr.mxu0 0.0
    %420 = vmatpush1.msra.mxu0 0.0
    %421 = vmatprep.subr.mxu0 0.0
    %422 = vmatpush1.msra.mxu0 0.0
    %423 = vmatprep.mubr.f32.mxu0 0.0
    %424 = vmatmul.mubr.f32.gmra.mrb[0].mxu0 %v343
    %v425 = vpop.f32.mrb[0].mxu0
    %v426 = vadd.f32 0.0, %v425
    %v427 = vpop.f32.mrb[0].mxu0
    %v428 = vadd.f32 0.0, %v427
    %429 = vdwg.mxu0
    %430 = vmatprep.subr.mxu0 %v55
    %431 = vmatpush1.msra.mxu0 %v54
    %432 = vmatprep.subr.mxu0 %v59
    %433 = vmatpush1.msra.mxu0 %v58
    %434 = vmatprep.subr.mxu0 %v63
    %435 = vmatpush1.msra.mxu0 %v62
    %436 = vmatprep.subr.mxu0 %v67
    %437 = vmatpush1.msra.mxu0 %v66
    %438 = vmatprep.subr.mxu0 %v71
    %439 = vmatpush1.msra.mxu0 %v70
    %440 = vmatprep.subr.mxu0 %v75
    %441 = vmatpush1.msra.mxu0 %v74
    %442 = vmatprep.subr.mxu0 %v79
    %443 = vmatpush1.msra.mxu0 %v78
    %444 = vmatprep.subr.mxu0 %v83
    %445 = vmatpush1.msra.mxu0 %v82
    %446 = vmatprep.subr.mxu0 %v87
    %447 = vmatpush1.msra.mxu0 %v86
    %448 = vmatprep.subr.mxu0 %v91
    %449 = vmatpush1.msra.mxu0 %v90
    %450 = vmatprep.subr.mxu0 %v95
    %451 = vmatpush1.msra.mxu0 %v94
    %452 = vmatprep.subr.mxu0 %v99
    %453 = vmatpush1.msra.mxu0 %v98
    %454 = vmatprep.subr.mxu0 %v103
    %455 = vmatpush1.msra.mxu0 %v102
    %456 = vmatprep.subr.mxu0 %v107
    %457 = vmatpush1.msra.mxu0 %v106
    %458 = vmatprep.subr.mxu0 %v111
    %459 = vmatpush1.msra.mxu0 %v110
    %460 = vmatprep.subr.mxu0 %v115
    %461 = vmatpush1.msra.mxu0 %v114
    %462 = vmatprep.subr.mxu0 0.0
    %463 = vmatpush1.msra.mxu0 0.0
    %464 = vmatprep.subr.mxu0 0.0
    %465 = vmatpush1.msra.mxu0 0.0
    %466 = vmatprep.subr.mxu0 0.0
    %467 = vmatpush1.msra.mxu0 0.0
    %468 = vmatprep.subr.mxu0 0.0
    %469 = vmatpush1.msra.mxu0 0.0
    %470 = vmatprep.subr.mxu0 0.0
    %471 = vmatpush1.msra.mxu0 0.0
    %472 = vmatprep.subr.mxu0 0.0
    %473 = vmatpush1.msra.mxu0 0.0
    %474 = vmatprep.subr.mxu0 0.0
    %475 = vmatpush1.msra.mxu0 0.0
    %476 = vmatprep.subr.mxu0 0.0
    %477 = vmatpush1.msra.mxu0 0.0
    %478 = vmatprep.subr.mxu0 0.0
    %479 = vmatpush1.msra.mxu0 0.0
    %480 = vmatprep.subr.mxu0 0.0
    %481 = vmatpush1.msra.mxu0 0.0
    %482 = vmatprep.subr.mxu0 0.0
    %483 = vmatpush1.msra.mxu0 0.0
    %484 = vmatprep.subr.mxu0 0.0
    %485 = vmatpush1.msra.mxu0 0.0
    %486 = vmatprep.subr.mxu0 0.0
    %487 = vmatpush1.msra.mxu0 0.0
    %488 = vmatprep.subr.mxu0 0.0
    %489 = vmatpush1.msra.mxu0 0.0
    %490 = vmatprep.subr.mxu0 0.0
    %491 = vmatpush1.msra.mxu0 0.0
    %492 = vmatprep.subr.mxu0 0.0
    %493 = vmatpush1.msra.mxu0 0.0
    %494 = vmatprep.mubr.f32.mxu0 0.0
    %495 = vmatmul.mubr.f32.gmra.mrb[0].mxu0 %v343
    %v496 = vpop.f32.mrb[0].mxu0
    %v497 = vadd.f32 0.0, %v496
    %v498 = vpop.f32.mrb[0].mxu0
    %v499 = vadd.f32 0.0, %v498
    %500 = vdwg.mxu0
    %v501 = vadd.f32 %v355, %v426
    %v502 = vadd.f32 %v356, %v428
    %v503 = vadd.f32 %v357, %v497
    %v504 = vadd.f32 %v358, %v499
    %v505 = vxor.u32 %v501, 2147483648
    %v506 = vxor.u32 %v502, 2147483648
    %v507 = vxor.u32 %v503, 2147483648
    %v508 = vmul.f32 %v505, 1.442695
    %v509 = vpow.pop %v508
    %v510 = vmul.f32 %v506, 1.442695
    %v511 = vpow.pop %v510
    %v512 = vmul.f32 %v507, 1.442695
    %v513 = vpow.pop %v512
    %v514 = vadd.f32 %v509, 1.0
    %v515 = vadd.f32 %v511, 1.0
    %v516 = vadd.f32 %v513, 1.0
    %v517 = vrcp.pop %v514
    %v518 = vmul.f32 1.0, %v517
    %v519 = vrcp.pop %v515
    %v520 = vmul.f32 1.0, %v519
    %v521 = vrcp.pop %v516
    %v522 = vmul.f32 1.0, %v521
    %v523 = vtanh.pop %v504
    %v524 = vmul.f32 %v520, %v341
    %v525 = vmul.f32 %v518, %v523
    %v526 = vadd.f32 %v524, %v525
    %v527 = vtanh.pop %v526
    %v528 = vmul.f32 %v522, %v527
    %s529 = scalar_lea.vmem %s0, 16
    %v530 = vld [vmem:[%s529] sm:$0xff]
    %532 = vset.pattern.permute.xlu0 0
    %533 = vperm.xlu0 %532, %v530
    %v534 = vpop.permute.xlu0 %533
    %v536 = vmul.f32 %v534, %v128
    %v537 = vmul.f32 %v534, %v132
    %v538 = vmul.f32 %v534, %v136
    %v539 = vmul.f32 %v534, %v140
    %v540 = vadd.f32 %v536, %v153
    %v541 = vadd.f32 %v537, %v157
    %v542 = vadd.f32 %v538, %v161
    %v543 = vadd.f32 %v539, %v165
    %544 = vmatprep.subr.mxu0 %v53
    %545 = vmatpush1.msra.mxu0 %v52
    %546 = vmatprep.subr.mxu0 %v57
    %547 = vmatpush1.msra.mxu0 %v56
    %548 = vmatprep.subr.mxu0 %v61
    %549 = vmatpush1.msra.mxu0 %v60
    %550 = vmatprep.subr.mxu0 %v65
    %551 = vmatpush1.msra.mxu0 %v64
    %552 = vmatprep.subr.mxu0 %v69
    %553 = vmatpush1.msra.mxu0 %v68
    %554 = vmatprep.subr.mxu0 %v73
    %555 = vmatpush1.msra.mxu0 %v72
    %556 = vmatprep.subr.mxu0 %v77
    %557 = vmatpush1.msra.mxu0 %v76
    %558 = vmatprep.subr.mxu0 %v81
    %559 = vmatpush1.msra.mxu0 %v80
    %560 = vmatprep.subr.mxu0 %v85
    %561 = vmatpush1.msra.mxu0 %v84
    %562 = vmatprep.subr.mxu0 %v89
    %563 = vmatpush1.msra.mxu0 %v88
    %564 = vmatprep.subr.mxu0 %v93
    %565 = vmatpush1.msra.mxu0 %v92
    %566 = vmatprep.subr.mxu0 %v97
    %567 = vmatpush1.msra.mxu0 %v96
    %568 = vmatprep.subr.mxu0 %v101
    %569 = vmatpush1.msra.mxu0 %v100
    %570 = vmatprep.subr.mxu0 %v105
    %571 = vmatpush1.msra.mxu0 %v104
    %572 = vmatprep.subr.mxu0 %v109
    %573 = vmatpush1.msra.mxu0 %v108
    %574 = vmatprep.subr.mxu0 %v113
    %575 = vmatpush1.msra.mxu0 %v112
    %576 = vmatprep.subr.mxu0 0.0
    %577 = vmatpush1.msra.mxu0 0.0
    %578 = vmatprep.subr.mxu0 0.0
    %579 = vmatpush1.msra.mxu0 0.0
    %580 = vmatprep.subr.mxu0 0.0
    %581 = vmatpush1.msra.mxu0 0.0
    %582 = vmatprep.subr.mxu0 0.0
    %583 = vmatpush1.msra.mxu0 0.0
    %584 = vmatprep.subr.mxu0 0.0
    %585 = vmatpush1.msra.mxu0 0.0
    %586 = vmatprep.subr.mxu0 0.0
    %587 = vmatpush1.msra.mxu0 0.0
    %588 = vmatprep.subr.mxu0 0.0
    %589 = vmatpush1.msra.mxu0 0.0
    %590 = vmatprep.subr.mxu0 0.0
    %591 = vmatpush1.msra.mxu0 0.0
    %592 = vmatprep.subr.mxu0 0.0
    %593 = vmatpush1.msra.mxu0 0.0
    %594 = vmatprep.subr.mxu0 0.0
    %595 = vmatpush1.msra.mxu0 0.0
    %596 = vmatprep.subr.mxu0 0.0
    %597 = vmatpush1.msra.mxu0 0.0
    %598 = vmatprep.subr.mxu0 0.0
    %599 = vmatpush1.msra.mxu0 0.0
    %600 = vmatprep.subr.mxu0 0.0
    %601 = vmatpush1.msra.mxu0 0.0
    %602 = vmatprep.subr.mxu0 0.0
    %603 = vmatpush1.msra.mxu0 0.0
    %604 = vmatprep.subr.mxu0 0.0
    %605 = vmatpush1.msra.mxu0 0.0
    %606 = vmatprep.subr.mxu0 0.0
    %607 = vmatpush1.msra.mxu0 0.0
    %608 = vmatprep.mubr.f32.mxu0 0.0
    %609 = vmatmul.mubr.f32.gmra.mrb[0].mxu0 %v528
    %v610 = vpop.f32.mrb[0].mxu0
    %v611 = vadd.f32 0.0, %v610
    %v612 = vpop.f32.mrb[0].mxu0
    %v613 = vadd.f32 0.0, %v612
    %614 = vdwg.mxu0
    %615 = vmatprep.subr.mxu0 %v55
    %616 = vmatpush1.msra.mxu0 %v54
    %617 = vmatprep.subr.mxu0 %v59
    %618 = vmatpush1.msra.mxu0 %v58
    %619 = vmatprep.subr.mxu0 %v63
    %620 = vmatpush1.msra.mxu0 %v62
    %621 = vmatprep.subr.mxu0 %v67
    %622 = vmatpush1.msra.mxu0 %v66
    %623 = vmatprep.subr.mxu0 %v71
    %624 = vmatpush1.msra.mxu0 %v70
    %625 = vmatprep.subr.mxu0 %v75
    %626 = vmatpush1.msra.mxu0 %v74
    %627 = vmatprep.subr.mxu0 %v79
    %628 = vmatpush1.msra.mxu0 %v78
    %629 = vmatprep.subr.mxu0 %v83
    %630 = vmatpush1.msra.mxu0 %v82
    %631 = vmatprep.subr.mxu0 %v87
    %632 = vmatpush1.msra.mxu0 %v86
    %633 = vmatprep.subr.mxu0 %v91
    %634 = vmatpush1.msra.mxu0 %v90
    %635 = vmatprep.subr.mxu0 %v95
    %636 = vmatpush1.msra.mxu0 %v94
    %637 = vmatprep.subr.mxu0 %v99
    %638 = vmatpush1.msra.mxu0 %v98
    %639 = vmatprep.subr.mxu0 %v103
    %640 = vmatpush1.msra.mxu0 %v102
    %641 = vmatprep.subr.mxu0 %v107
    %642 = vmatpush1.msra.mxu0 %v106
    %643 = vmatprep.subr.mxu0 %v111
    %644 = vmatpush1.msra.mxu0 %v110
    %645 = vmatprep.subr.mxu0 %v115
    %646 = vmatpush1.msra.mxu0 %v114
    %647 = vmatprep.subr.mxu0 0.0
    %648 = vmatpush1.msra.mxu0 0.0
    %649 = vmatprep.subr.mxu0 0.0
    %650 = vmatpush1.msra.mxu0 0.0
    %651 = vmatprep.subr.mxu0 0.0
    %652 = vmatpush1.msra.mxu0 0.0
    %653 = vmatprep.subr.mxu0 0.0
    %654 = vmatpush1.msra.mxu0 0.0
    %655 = vmatprep.subr.mxu0 0.0
    %656 = vmatpush1.msra.mxu0 0.0
    %657 = vmatprep.subr.mxu0 0.0
    %658 = vmatpush1.msra.mxu0 0.0
    %659 = vmatprep.subr.mxu0 0.0
    %660 = vmatpush1.msra.mxu0 0.0
    %661 = vmatprep.subr.mxu0 0.0
    %662 = vmatpush1.msra.mxu0 0.0
    %663 = vmatprep.subr.mxu0 0.0
    %664 = vmatpush1.msra.mxu0 0.0
    %665 = vmatprep.subr.mxu0 0.0
    %666 = vmatpush1.msra.mxu0 0.0
    %667 = vmatprep.subr.mxu0 0.0
    %668 = vmatpush1.msra.mxu0 0.0
    %669 = vmatprep.subr.mxu0 0.0
    %670 = vmatpush1.msra.mxu0 0.0
    %671 = vmatprep.subr.mxu0 0.0
    %672 = vmatpush1.msra.mxu0 0.0
    %673 = vmatprep.subr.mxu0 0.0
    %674 = vmatpush1.msra.mxu0 0.0
    %675 = vmatprep.subr.mxu0 0.0
    %676 = vmatpush1.msra.mxu0 0.0
    %677 = vmatprep.subr.mxu0 0.0
    %678 = vmatpush1.msra.mxu0 0.0
    %679 = vmatprep.mubr.f32.mxu0 0.0
    %680 = vmatmul.mubr.f32.gmra.mrb[0].mxu0 %v528
    %v681 = vpop.f32.mrb[0].mxu0
    %v682 = vadd.f32 0.0, %v681
    %v683 = vpop.f32.mrb[0].mxu0
    %v684 = vadd.f32 0.0, %v683
    %685 = vdwg.mxu0
    %v686 = vadd.f32 %v540, %v611
    %v687 = vadd.f32 %v541, %v613
    %v688 = vadd.f32 %v542, %v682
    %v689 = vadd.f32 %v543, %v684
    %v690 = vxor.u32 %v686, 2147483648
    %v691 = vxor.u32 %v687, 2147483648
    %v692 = vxor.u32 %v688, 2147483648
    %v693 = vmul.f32 %v690, 1.442695
    %v694 = vpow.pop %v693
    %v695 = vmul.f32 %v691, 1.442695
    %v696 = vpow.pop %v695
    %v697 = vmul.f32 %v692, 1.442695
    %v698 = vpow.pop %v697
    %v699 = vadd.f32 %v694, 1.0
    %v700 = vadd.f32 %v696, 1.0
    %v701 = vadd.f32 %v698, 1.0
    %v702 = vrcp.pop %v699
    %v703 = vmul.f32 1.0, %v702
    %v704 = vrcp.pop %v700
    %v705 = vmul.f32 1.0, %v704
    %v706 = vrcp.pop %v701
    %v707 = vmul.f32 1.0, %v706
    %v708 = vtanh.pop %v689
    %v709 = vmul.f32 %v705, %v526
    %v710 = vmul.f32 %v703, %v708
    %v711 = vadd.f32 %v709, %v710
    %v712 = vtanh.pop %v711
    %v713 = vmul.f32 %v707, %v712
    %s714 = scalar_lea.vmem %s0, 24
    %v715 = vld [vmem:[%s714] sm:$0xff]
    %717 = vset.pattern.permute.xlu0 0
    %718 = vperm.xlu0 %717, %v715
    %v719 = vpop.permute.xlu0 %718
    %v721 = vmul.f32 %v719, %v128
    %v722 = vmul.f32 %v719, %v132
    %v723 = vmul.f32 %v719, %v136
    %v724 = vmul.f32 %v719, %v140
    %v725 = vadd.f32 %v721, %v153
    %v726 = vadd.f32 %v722, %v157
    %v727 = vadd.f32 %v723, %v161
    %v728 = vadd.f32 %v724, %v165
    %729 = vmatprep.subr.mxu0 %v53
    %730 = vmatpush1.msra.mxu0 %v52
    %731 = vmatprep.subr.mxu0 %v57
    %732 = vmatpush1.msra.mxu0 %v56
    %733 = vmatprep.subr.mxu0 %v61
    %734 = vmatpush1.msra.mxu0 %v60
    %735 = vmatprep.subr.mxu0 %v65
    %736 = vmatpush1.msra.mxu0 %v64
    %737 = vmatprep.subr.mxu0 %v69
    %738 = vmatpush1.msra.mxu0 %v68
    %739 = vmatprep.subr.mxu0 %v73
    %740 = vmatpush1.msra.mxu0 %v72
    %741 = vmatprep.subr.mxu0 %v77
    %742 = vmatpush1.msra.mxu0 %v76
    %743 = vmatprep.subr.mxu0 %v81
    %744 = vmatpush1.msra.mxu0 %v80
    %745 = vmatprep.subr.mxu0 %v85
    %746 = vmatpush1.msra.mxu0 %v84
    %747 = vmatprep.subr.mxu0 %v89
    %748 = vmatpush1.msra.mxu0 %v88
    %749 = vmatprep.subr.mxu0 %v93
    %750 = vmatpush1.msra.mxu0 %v92
    %751 = vmatprep.subr.mxu0 %v97
    %752 = vmatpush1.msra.mxu0 %v96
    %753 = vmatprep.subr.mxu0 %v101
    %754 = vmatpush1.msra.mxu0 %v100
    %755 = vmatprep.subr.mxu0 %v105
    %756 = vmatpush1.msra.mxu0 %v104
    %757 = vmatprep.subr.mxu0 %v109
    %758 = vmatpush1.msra.mxu0 %v108
    %759 = vmatprep.subr.mxu0 %v113
    %760 = vmatpush1.msra.mxu0 %v112
    %761 = vmatprep.subr.mxu0 0.0
    %762 = vmatpush1.msra.mxu0 0.0
    %763 = vmatprep.subr.mxu0 0.0
    %764 = vmatpush1.msra.mxu0 0.0
    %765 = vmatprep.subr.mxu0 0.0
    %766 = vmatpush1.msra.mxu0 0.0
    %767 = vmatprep.subr.mxu0 0.0
    %768 = vmatpush1.msra.mxu0 0.0
    %769 = vmatprep.subr.mxu0 0.0
    %770 = vmatpush1.msra.mxu0 0.0
    %771 = vmatprep.subr.mxu0 0.0
    %772 = vmatpush1.msra.mxu0 0.0
    %773 = vmatprep.subr.mxu0 0.0
    %774 = vmatpush1.msra.mxu0 0.0
    %775 = vmatprep.subr.mxu0 0.0
    %776 = vmatpush1.msra.mxu0 0.0
    %777 = vmatprep.subr.mxu0 0.0
    %778 = vmatpush1.msra.mxu0 0.0
    %779 = vmatprep.subr.mxu0 0.0
    %780 = vmatpush1.msra.mxu0 0.0
    %781 = vmatprep.subr.mxu0 0.0
    %782 = vmatpush1.msra.mxu0 0.0
    %783 = vmatprep.subr.mxu0 0.0
    %784 = vmatpush1.msra.mxu0 0.0
    %785 = vmatprep.subr.mxu0 0.0
    %786 = vmatpush1.msra.mxu0 0.0
    %787 = vmatprep.subr.mxu0 0.0
    %788 = vmatpush1.msra.mxu0 0.0
    %789 = vmatprep.subr.mxu0 0.0
    %790 = vmatpush1.msra.mxu0 0.0
    %791 = vmatprep.subr.mxu0 0.0
    %792 = vmatpush1.msra.mxu0 0.0
    %793 = vmatprep.mubr.f32.mxu0 0.0
    %794 = vmatmul.mubr.f32.gmra.mrb[0].mxu0 %v713
    %v795 = vpop.f32.mrb[0].mxu0
    %v796 = vadd.f32 0.0, %v795
    %v797 = vpop.f32.mrb[0].mxu0
    %v798 = vadd.f32 0.0, %v797
    %799 = vdwg.mxu0
    %800 = vmatprep.subr.mxu0 %v55
    %801 = vmatpush1.msra.mxu0 %v54
    %802 = vmatprep.subr.mxu0 %v59
    %803 = vmatpush1.msra.mxu0 %v58
    %804 = vmatprep.subr.mxu0 %v63
    %805 = vmatpush1.msra.mxu0 %v62
    %806 = vmatprep.subr.mxu0 %v67
    %807 = vmatpush1.msra.mxu0 %v66
    %808 = vmatprep.subr.mxu0 %v71
    %809 = vmatpush1.msra.mxu0 %v70
    %810 = vmatprep.subr.mxu0 %v75
    %811 = vmatpush1.msra.mxu0 %v74
    %812 = vmatprep.subr.mxu0 %v79
    %813 = vmatpush1.msra.mxu0 %v78
    %814 = vmatprep.subr.mxu0 %v83
    %815 = vmatpush1.msra.mxu0 %v82
    %816 = vmatprep.subr.mxu0 %v87
    %817 = vmatpush1.msra.mxu0 %v86
    %818 = vmatprep.subr.mxu0 %v91
    %819 = vmatpush1.msra.mxu0 %v90
    %820 = vmatprep.subr.mxu0 %v95
    %821 = vmatpush1.msra.mxu0 %v94
    %822 = vmatprep.subr.mxu0 %v99
    %823 = vmatpush1.msra.mxu0 %v98
    %824 = vmatprep.subr.mxu0 %v103
    %825 = vmatpush1.msra.mxu0 %v102
    %826 = vmatprep.subr.mxu0 %v107
    %827 = vmatpush1.msra.mxu0 %v106
    %828 = vmatprep.subr.mxu0 %v111
    %829 = vmatpush1.msra.mxu0 %v110
    %830 = vmatprep.subr.mxu0 %v115
    %831 = vmatpush1.msra.mxu0 %v114
    %832 = vmatprep.subr.mxu0 0.0
    %833 = vmatpush1.msra.mxu0 0.0
    %834 = vmatprep.subr.mxu0 0.0
    %835 = vmatpush1.msra.mxu0 0.0
    %836 = vmatprep.subr.mxu0 0.0
    %837 = vmatpush1.msra.mxu0 0.0
    %838 = vmatprep.subr.mxu0 0.0
    %839 = vmatpush1.msra.mxu0 0.0
    %840 = vmatprep.subr.mxu0 0.0
    %841 = vmatpush1.msra.mxu0 0.0
    %842 = vmatprep.subr.mxu0 0.0
    %843 = vmatpush1.msra.mxu0 0.0
    %844 = vmatprep.subr.mxu0 0.0
    %845 = vmatpush1.msra.mxu0 0.0
    %846 = vmatprep.subr.mxu0 0.0
    %847 = vmatpush1.msra.mxu0 0.0
    %848 = vmatprep.subr.mxu0 0.0
    %849 = vmatpush1.msra.mxu0 0.0
    %850 = vmatprep.subr.mxu0 0.0
    %851 = vmatpush1.msra.mxu0 0.0
    %852 = vmatprep.subr.mxu0 0.0
    %853 = vmatpush1.msra.mxu0 0.0
    %854 = vmatprep.subr.mxu0 0.0
    %855 = vmatpush1.msra.mxu0 0.0
    %856 = vmatprep.subr.mxu0 0.0
    %857 = vmatpush1.msra.mxu0 0.0
    %858 = vmatprep.subr.mxu0 0.0
    %859 = vmatpush1.msra.mxu0 0.0
    %860 = vmatprep.subr.mxu0 0.0
    %861 = vmatpush1.msra.mxu0 0.0
    %862 = vmatprep.subr.mxu0 0.0
    %863 = vmatpush1.msra.mxu0 0.0
    %864 = vmatprep.mubr.f32.mxu0 0.0
    %865 = vmatmul.mubr.f32.gmra.mrb[0].mxu0 %v713
    %v866 = vpop.f32.mrb[0].mxu0
    %v867 = vadd.f32 0.0, %v866
    %v868 = vpop.f32.mrb[0].mxu0
    %v869 = vadd.f32 0.0, %v868
    %870 = vdwg.mxu0
    %v871 = vadd.f32 %v725, %v796
    %v872 = vadd.f32 %v726, %v798
    %v873 = vadd.f32 %v727, %v867
    %v874 = vadd.f32 %v728, %v869
    %v875 = vxor.u32 %v871, 2147483648
    %v876 = vxor.u32 %v872, 2147483648
    %v877 = vxor.u32 %v873, 2147483648
    %v878 = vmul.f32 %v875, 1.442695
    %v879 = vpow.pop %v878
    %v880 = vmul.f32 %v876, 1.442695
    %v881 = vpow.pop %v880
    %v882 = vmul.f32 %v877, 1.442695
    %v883 = vpow.pop %v882
    %v884 = vadd.f32 %v879, 1.0
    %v885 = vadd.f32 %v881, 1.0
    %v886 = vadd.f32 %v883, 1.0
    %v887 = vrcp.pop %v884
    %v888 = vmul.f32 1.0, %v887
    %v889 = vrcp.pop %v885
    %v890 = vmul.f32 1.0, %v889
    %v891 = vrcp.pop %v886
    %v892 = vmul.f32 1.0, %v891
    %v893 = vtanh.pop %v874
    %v894 = vmul.f32 %v890, %v711
    %v895 = vmul.f32 %v888, %v893
    %v896 = vadd.f32 %v894, %v895
    %v897 = vtanh.pop %v896
    %v898 = vmul.f32 %v892, %v897
    %s899 = scalar_lea.vmem %s0, 32
    %v900 = vld [vmem:[%s899] sm:$0xff]
    %902 = vset.pattern.permute.xlu0 0
    %903 = vperm.xlu0 %902, %v900
    %v904 = vpop.permute.xlu0 %903
    %v906 = vmul.f32 %v904, %v128
    %v907 = vmul.f32 %v904, %v132
    %v908 = vmul.f32 %v904, %v136
    %v909 = vmul.f32 %v904, %v140
    %v910 = vadd.f32 %v906, %v153
    %v911 = vadd.f32 %v907, %v157
    %v912 = vadd.f32 %v908, %v161
    %v913 = vadd.f32 %v909, %v165
    %914 = vmatprep.subr.mxu0 %v53
    %915 = vmatpush1.msra.mxu0 %v52
    %916 = vmatprep.subr.mxu0 %v57
    %917 = vmatpush1.msra.mxu0 %v56
    %918 = vmatprep.subr.mxu0 %v61
    %919 = vmatpush1.msra.mxu0 %v60
    %920 = vmatprep.subr.mxu0 %v65
    %921 = vmatpush1.msra.mxu0 %v64
    %922 = vmatprep.subr.mxu0 %v69
    %923 = vmatpush1.msra.mxu0 %v68
    %924 = vmatprep.subr.mxu0 %v73
    %925 = vmatpush1.msra.mxu0 %v72
    %926 = vmatprep.subr.mxu0 %v77
    %927 = vmatpush1.msra.mxu0 %v76
    %928 = vmatprep.subr.mxu0 %v81
    %929 = vmatpush1.msra.mxu0 %v80
    %930 = vmatprep.subr.mxu0 %v85
    %931 = vmatpush1.msra.mxu0 %v84
    %932 = vmatprep.subr.mxu0 %v89
    %933 = vmatpush1.msra.mxu0 %v88
    %934 = vmatprep.subr.mxu0 %v93
    %935 = vmatpush1.msra.mxu0 %v92
    %936 = vmatprep.subr.mxu0 %v97
    %937 = vmatpush1.msra.mxu0 %v96
    %938 = vmatprep.subr.mxu0 %v101
    %939 = vmatpush1.msra.mxu0 %v100
    %940 = vmatprep.subr.mxu0 %v105
    %941 = vmatpush1.msra.mxu0 %v104
    %942 = vmatprep.subr.mxu0 %v109
    %943 = vmatpush1.msra.mxu0 %v108
    %944 = vmatprep.subr.mxu0 %v113
    %945 = vmatpush1.msra.mxu0 %v112
    %946 = vmatprep.subr.mxu0 0.0
    %947 = vmatpush1.msra.mxu0 0.0
    %948 = vmatprep.subr.mxu0 0.0
    %949 = vmatpush1.msra.mxu0 0.0
    %950 = vmatprep.subr.mxu0 0.0
    %951 = vmatpush1.msra.mxu0 0.0
    %952 = vmatprep.subr.mxu0 0.0
    %953 = vmatpush1.msra.mxu0 0.0
    %954 = vmatprep.subr.mxu0 0.0
    %955 = vmatpush1.msra.mxu0 0.0
    %956 = vmatprep.subr.mxu0 0.0
    %957 = vmatpush1.msra.mxu0 0.0
    %958 = vmatprep.subr.mxu0 0.0
    %959 = vmatpush1.msra.mxu0 0.0
    %960 = vmatprep.subr.mxu0 0.0
    %961 = vmatpush1.msra.mxu0 0.0
    %962 = vmatprep.subr.mxu0 0.0
    %963 = vmatpush1.msra.mxu0 0.0
    %964 = vmatprep.subr.mxu0 0.0
    %965 = vmatpush1.msra.mxu0 0.0
    %966 = vmatprep.subr.mxu0 0.0
    %967 = vmatpush1.msra.mxu0 0.0
    %968 = vmatprep.subr.mxu0 0.0
    %969 = vmatpush1.msra.mxu0 0.0
    %970 = vmatprep.subr.mxu0 0.0
    %971 = vmatpush1.msra.mxu0 0.0
    %972 = vmatprep.subr.mxu0 0.0
    %973 = vmatpush1.msra.mxu0 0.0
    %974 = vmatprep.subr.mxu0 0.0
    %975 = vmatpush1.msra.mxu0 0.0
    %976 = vmatprep.subr.mxu0 0.0
    %977 = vmatpush1.msra.mxu0 0.0
    %978 = vmatprep.mubr.f32.mxu0 0.0
    %979 = vmatmul.mubr.f32.gmra.mrb[0].mxu0 %v898
    %v980 = vpop.f32.mrb[0].mxu0
    %v981 = vadd.f32 0.0, %v980
    %v982 = vpop.f32.mrb[0].mxu0
    %v983 = vadd.f32 0.0, %v982
    %984 = vdwg.mxu0
    %985 = vmatprep.subr.mxu0 %v55
    %986 = vmatpush1.msra.mxu0 %v54
    %987 = vmatprep.subr.mxu0 %v59
    %988 = vmatpush1.msra.mxu0 %v58
    %989 = vmatprep.subr.mxu0 %v63
    %990 = vmatpush1.msra.mxu0 %v62
    %991 = vmatprep.subr.mxu0 %v67
    %992 = vmatpush1.msra.mxu0 %v66
    %993 = vmatprep.subr.mxu0 %v71
    %994 = vmatpush1.msra.mxu0 %v70
    %995 = vmatprep.subr.mxu0 %v75
    %996 = vmatpush1.msra.mxu0 %v74
    %997 = vmatprep.subr.mxu0 %v79
    %998 = vmatpush1.msra.mxu0 %v78
    %999 = vmatprep.subr.mxu0 %v83
    %1000 = vmatpush1.msra.mxu0 %v82
    %1001 = vmatprep.subr.mxu0 %v87
    %1002 = vmatpush1.msra.mxu0 %v86
    %1003 = vmatprep.subr.mxu0 %v91
    %1004 = vmatpush1.msra.mxu0 %v90
    %1005 = vmatprep.subr.mxu0 %v95
    %1006 = vmatpush1.msra.mxu0 %v94
    %1007 = vmatprep.subr.mxu0 %v99
    %1008 = vmatpush1.msra.mxu0 %v98
    %1009 = vmatprep.subr.mxu0 %v103
    %1010 = vmatpush1.msra.mxu0 %v102
    %1011 = vmatprep.subr.mxu0 %v107
    %1012 = vmatpush1.msra.mxu0 %v106
    %1013 = vmatprep.subr.mxu0 %v111
    %1014 = vmatpush1.msra.mxu0 %v110
    %1015 = vmatprep.subr.mxu0 %v115
    %1016 = vmatpush1.msra.mxu0 %v114
    %1017 = vmatprep.subr.mxu0 0.0
    %1018 = vmatpush1.msra.mxu0 0.0
    %1019 = vmatprep.subr.mxu0 0.0
    %1020 = vmatpush1.msra.mxu0 0.0
    %1021 = vmatprep.subr.mxu0 0.0
    %1022 = vmatpush1.msra.mxu0 0.0
    %1023 = vmatprep.subr.mxu0 0.0
    %1024 = vmatpush1.msra.mxu0 0.0
    %1025 = vmatprep.subr.mxu0 0.0
    %1026 = vmatpush1.msra.mxu0 0.0
    %1027 = vmatprep.subr.mxu0 0.0
    %1028 = vmatpush1.msra.mxu0 0.0
    %1029 = vmatprep.subr.mxu0 0.0
    %1030 = vmatpush1.msra.mxu0 0.0
    %1031 = vmatprep.subr.mxu0 0.0
    %1032 = vmatpush1.msra.mxu0 0.0
    %1033 = vmatprep.subr.mxu0 0.0
    %1034 = vmatpush1.msra.mxu0 0.0
    %1035 = vmatprep.subr.mxu0 0.0
    %1036 = vmatpush1.msra.mxu0 0.0
    %1037 = vmatprep.subr.mxu0 0.0
    %1038 = vmatpush1.msra.mxu0 0.0
    %1039 = vmatprep.subr.mxu0 0.0
    %1040 = vmatpush1.msra.mxu0 0.0
    %1041 = vmatprep.subr.mxu0 0.0
    %1042 = vmatpush1.msra.mxu0 0.0
    %1043 = vmatprep.subr.mxu0 0.0
    %1044 = vmatpush1.msra.mxu0 0.0
    %1045 = vmatprep.subr.mxu0 0.0
    %1046 = vmatpush1.msra.mxu0 0.0
    %1047 = vmatprep.subr.mxu0 0.0
    %1048 = vmatpush1.msra.mxu0 0.0
    %1049 = vmatprep.mubr.f32.mxu0 0.0
    %1050 = vmatmul.mubr.f32.gmra.mrb[0].mxu0 %v898
    %v1051 = vpop.f32.mrb[0].mxu0
    %v1052 = vadd.f32 0.0, %v1051
    %v1053 = vpop.f32.mrb[0].mxu0
    %v1054 = vadd.f32 0.0, %v1053
    %1055 = vdwg.mxu0
    %v1056 = vadd.f32 %v910, %v981
    %v1057 = vadd.f32 %v911, %v983
    %v1058 = vadd.f32 %v912, %v1052
    %v1059 = vadd.f32 %v913, %v1054
    %v1060 = vxor.u32 %v1056, 2147483648
    %v1061 = vxor.u32 %v1057, 2147483648
    %v1062 = vxor.u32 %v1058, 2147483648
    %v1063 = vmul.f32 %v1060, 1.442695
    %v1064 = vpow.pop %v1063
    %v1065 = vmul.f32 %v1061, 1.442695
    %v1066 = vpow.pop %v1065
    %v1067 = vmul.f32 %v1062, 1.442695
    %v1068 = vpow.pop %v1067
    %v1069 = vadd.f32 %v1064, 1.0
    %v1070 = vadd.f32 %v1066, 1.0
    %v1071 = vadd.f32 %v1068, 1.0
    %v1072 = vrcp.pop %v1069
    %v1073 = vmul.f32 1.0, %v1072
    %v1074 = vrcp.pop %v1070
    %v1075 = vmul.f32 1.0, %v1074
    %v1076 = vrcp.pop %v1071
    %v1077 = vmul.f32 1.0, %v1076
    %v1078 = vtanh.pop %v1059
    %v1079 = vmul.f32 %v1075, %v896
    %v1080 = vmul.f32 %v1073, %v1078
    %v1081 = vadd.f32 %v1079, %v1080
    %v1082 = vtanh.pop %v1081
    %v1083 = vmul.f32 %v1077, %v1082
    %s1084 = scalar_lea.vmem %s0, 40
    %v1085 = vld [vmem:[%s1084] sm:$0xff]
    %1087 = vset.pattern.permute.xlu0 0
    %1088 = vperm.xlu0 %1087, %v1085
    %v1089 = vpop.permute.xlu0 %1088
    %v1091 = vmul.f32 %v1089, %v128
    %v1092 = vmul.f32 %v1089, %v132
    %v1093 = vmul.f32 %v1089, %v136
    %v1094 = vmul.f32 %v1089, %v140
    %v1095 = vadd.f32 %v1091, %v153
    %v1096 = vadd.f32 %v1092, %v157
    %v1097 = vadd.f32 %v1093, %v161
    %v1098 = vadd.f32 %v1094, %v165
    %1099 = vmatprep.subr.mxu0 %v53
    %1100 = vmatpush1.msra.mxu0 %v52
    %1101 = vmatprep.subr.mxu0 %v57
    %1102 = vmatpush1.msra.mxu0 %v56
    %1103 = vmatprep.subr.mxu0 %v61
    %1104 = vmatpush1.msra.mxu0 %v60
    %1105 = vmatprep.subr.mxu0 %v65
    %1106 = vmatpush1.msra.mxu0 %v64
    %1107 = vmatprep.subr.mxu0 %v69
    %1108 = vmatpush1.msra.mxu0 %v68
    %1109 = vmatprep.subr.mxu0 %v73
    %1110 = vmatpush1.msra.mxu0 %v72
    %1111 = vmatprep.subr.mxu0 %v77
    %1112 = vmatpush1.msra.mxu0 %v76
    %1113 = vmatprep.subr.mxu0 %v81
    %1114 = vmatpush1.msra.mxu0 %v80
    %1115 = vmatprep.subr.mxu0 %v85
    %1116 = vmatpush1.msra.mxu0 %v84
    %1117 = vmatprep.subr.mxu0 %v89
    %1118 = vmatpush1.msra.mxu0 %v88
    %1119 = vmatprep.subr.mxu0 %v93
    %1120 = vmatpush1.msra.mxu0 %v92
    %1121 = vmatprep.subr.mxu0 %v97
    %1122 = vmatpush1.msra.mxu0 %v96
    %1123 = vmatprep.subr.mxu0 %v101
    %1124 = vmatpush1.msra.mxu0 %v100
    %1125 = vmatprep.subr.mxu0 %v105
    %1126 = vmatpush1.msra.mxu0 %v104
    %1127 = vmatprep.subr.mxu0 %v109
    %1128 = vmatpush1.msra.mxu0 %v108
    %1129 = vmatprep.subr.mxu0 %v113
    %1130 = vmatpush1.msra.mxu0 %v112
    %1131 = vmatprep.subr.mxu0 0.0
    %1132 = vmatpush1.msra.mxu0 0.0
    %1133 = vmatprep.subr.mxu0 0.0
    %1134 = vmatpush1.msra.mxu0 0.0
    %1135 = vmatprep.subr.mxu0 0.0
    %1136 = vmatpush1.msra.mxu0 0.0
    %1137 = vmatprep.subr.mxu0 0.0
    %1138 = vmatpush1.msra.mxu0 0.0
    %1139 = vmatprep.subr.mxu0 0.0
    %1140 = vmatpush1.msra.mxu0 0.0
    %1141 = vmatprep.subr.mxu0 0.0
    %1142 = vmatpush1.msra.mxu0 0.0
    %1143 = vmatprep.subr.mxu0 0.0
    %1144 = vmatpush1.msra.mxu0 0.0
    %1145 = vmatprep.subr.mxu0 0.0
    %1146 = vmatpush1.msra.mxu0 0.0
    %1147 = vmatprep.subr.mxu0 0.0
    %1148 = vmatpush1.msra.mxu0 0.0
    %1149 = vmatprep.subr.mxu0 0.0
    %1150 = vmatpush1.msra.mxu0 0.0
    %1151 = vmatprep.subr.mxu0 0.0
    %1152 = vmatpush1.msra.mxu0 0.0
    %1153 = vmatprep.subr.mxu0 0.0
    %1154 = vmatpush1.msra.mxu0 0.0
    %1155 = vmatprep.subr.mxu0 0.0
    %1156 = vmatpush1.msra.mxu0 0.0
    %1157 = vmatprep.subr.mxu0 0.0
    %1158 = vmatpush1.msra.mxu0 0.0
    %1159 = vmatprep.subr.mxu0 0.0
    %1160 = vmatpush1.msra.mxu0 0.0
    %1161 = vmatprep.subr.mxu0 0.0
    %1162 = vmatpush1.msra.mxu0 0.0
    %1163 = vmatprep.mubr.f32.mxu0 0.0
    %1164 = vmatmul.mubr.f32.gmra.mrb[0].mxu0 %v1083
    %v1165 = vpop.f32.mrb[0].mxu0
    %v1166 = vadd.f32 0.0, %v1165
    %v1167 = vpop.f32.mrb[0].mxu0
    %v1168 = vadd.f32 0.0, %v1167
    %1169 = vdwg.mxu0
    %1170 = vmatprep.subr.mxu0 %v55
    %1171 = vmatpush1.msra.mxu0 %v54
    %1172 = vmatprep.subr.mxu0 %v59
    %1173 = vmatpush1.msra.mxu0 %v58
    %1174 = vmatprep.subr.mxu0 %v63
    %1175 = vmatpush1.msra.mxu0 %v62
    %1176 = vmatprep.subr.mxu0 %v67
    %1177 = vmatpush1.msra.mxu0 %v66
    %1178 = vmatprep.subr.mxu0 %v71
    %1179 = vmatpush1.msra.mxu0 %v70
    %1180 = vmatprep.subr.mxu0 %v75
    %1181 = vmatpush1.msra.mxu0 %v74
    %1182 = vmatprep.subr.mxu0 %v79
    %1183 = vmatpush1.msra.mxu0 %v78
    %1184 = vmatprep.subr.mxu0 %v83
    %1185 = vmatpush1.msra.mxu0 %v82
    %1186 = vmatprep.subr.mxu0 %v87
    %1187 = vmatpush1.msra.mxu0 %v86
    %1188 = vmatprep.subr.mxu0 %v91
    %1189 = vmatpush1.msra.mxu0 %v90
    %1190 = vmatprep.subr.mxu0 %v95
    %1191 = vmatpush1.msra.mxu0 %v94
    %1192 = vmatprep.subr.mxu0 %v99
    %1193 = vmatpush1.msra.mxu0 %v98
    %1194 = vmatprep.subr.mxu0 %v103
    %1195 = vmatpush1.msra.mxu0 %v102
    %1196 = vmatprep.subr.mxu0 %v107
    %1197 = vmatpush1.msra.mxu0 %v106
    %1198 = vmatprep.subr.mxu0 %v111
    %1199 = vmatpush1.msra.mxu0 %v110
    %1200 = vmatprep.subr.mxu0 %v115
    %1201 = vmatpush1.msra.mxu0 %v114
    %1202 = vmatprep.subr.mxu0 0.0
    %1203 = vmatpush1.msra.mxu0 0.0
    %1204 = vmatprep.subr.mxu0 0.0
    %1205 = vmatpush1.msra.mxu0 0.0
    %1206 = vmatprep.subr.mxu0 0.0
    %1207 = vmatpush1.msra.mxu0 0.0
    %1208 = vmatprep.subr.mxu0 0.0
    %1209 = vmatpush1.msra.mxu0 0.0
    %1210 = vmatprep.subr.mxu0 0.0
    %1211 = vmatpush1.msra.mxu0 0.0
    %1212 = vmatprep.subr.mxu0 0.0
    %1213 = vmatpush1.msra.mxu0 0.0
    %1214 = vmatprep.subr.mxu0 0.0
    %1215 = vmatpush1.msra.mxu0 0.0
    %1216 = vmatprep.subr.mxu0 0.0
    %1217 = vmatpush1.msra.mxu0 0.0
    %1218 = vmatprep.subr.mxu0 0.0
    %1219 = vmatpush1.msra.mxu0 0.0
    %1220 = vmatprep.subr.mxu0 0.0
    %1221 = vmatpush1.msra.mxu0 0.0
    %1222 = vmatprep.subr.mxu0 0.0
    %1223 = vmatpush1.msra.mxu0 0.0
    %1224 = vmatprep.subr.mxu0 0.0
    %1225 = vmatpush1.msra.mxu0 0.0
    %1226 = vmatprep.subr.mxu0 0.0
    %1227 = vmatpush1.msra.mxu0 0.0
    %1228 = vmatprep.subr.mxu0 0.0
    %1229 = vmatpush1.msra.mxu0 0.0
    %1230 = vmatprep.subr.mxu0 0.0
    %1231 = vmatpush1.msra.mxu0 0.0
    %1232 = vmatprep.subr.mxu0 0.0
    %1233 = vmatpush1.msra.mxu0 0.0
    %1234 = vmatprep.mubr.f32.mxu0 0.0
    %1235 = vmatmul.mubr.f32.gmra.mrb[0].mxu0 %v1083
    %v1236 = vpop.f32.mrb[0].mxu0
    %v1237 = vadd.f32 0.0, %v1236
    %v1238 = vpop.f32.mrb[0].mxu0
    %v1239 = vadd.f32 0.0, %v1238
    %1240 = vdwg.mxu0
    %v1241 = vadd.f32 %v1095, %v1166
    %v1242 = vadd.f32 %v1096, %v1168
    %v1243 = vadd.f32 %v1097, %v1237
    %v1244 = vadd.f32 %v1098, %v1239
    %v1245 = vxor.u32 %v1241, 2147483648
    %v1246 = vxor.u32 %v1242, 2147483648
    %v1247 = vxor.u32 %v1243, 2147483648
    %v1248 = vmul.f32 %v1245, 1.442695
    %v1249 = vpow.pop %v1248
    %v1250 = vmul.f32 %v1246, 1.442695
    %v1251 = vpow.pop %v1250
    %v1252 = vmul.f32 %v1247, 1.442695
    %v1253 = vpow.pop %v1252
    %v1254 = vadd.f32 %v1249, 1.0
    %v1255 = vadd.f32 %v1251, 1.0
    %v1256 = vadd.f32 %v1253, 1.0
    %v1257 = vrcp.pop %v1254
    %v1258 = vmul.f32 1.0, %v1257
    %v1259 = vrcp.pop %v1255
    %v1260 = vmul.f32 1.0, %v1259
    %v1261 = vrcp.pop %v1256
    %v1262 = vmul.f32 1.0, %v1261
    %v1263 = vtanh.pop %v1244
    %v1264 = vmul.f32 %v1260, %v1081
    %v1265 = vmul.f32 %v1258, %v1263
    %v1266 = vadd.f32 %v1264, %v1265
    %v1267 = vtanh.pop %v1266
    %v1268 = vmul.f32 %v1262, %v1267
    %s1269 = scalar_lea.vmem %s0, 48
    %v1270 = vld [vmem:[%s1269] sm:$0xff]
    %1272 = vset.pattern.permute.xlu0 0
    %1273 = vperm.xlu0 %1272, %v1270
    %v1274 = vpop.permute.xlu0 %1273
    %v1276 = vmul.f32 %v1274, %v128
    %v1277 = vmul.f32 %v1274, %v132
    %v1278 = vmul.f32 %v1274, %v136
    %v1279 = vmul.f32 %v1274, %v140
    %v1280 = vadd.f32 %v1276, %v153
    %v1281 = vadd.f32 %v1277, %v157
    %v1282 = vadd.f32 %v1278, %v161
    %v1283 = vadd.f32 %v1279, %v165
    %1284 = vmatprep.subr.mxu0 %v53
    %1285 = vmatpush1.msra.mxu0 %v52
    %1286 = vmatprep.subr.mxu0 %v57
    %1287 = vmatpush1.msra.mxu0 %v56
    %1288 = vmatprep.subr.mxu0 %v61
    %1289 = vmatpush1.msra.mxu0 %v60
    %1290 = vmatprep.subr.mxu0 %v65
    %1291 = vmatpush1.msra.mxu0 %v64
    %1292 = vmatprep.subr.mxu0 %v69
    %1293 = vmatpush1.msra.mxu0 %v68
    %1294 = vmatprep.subr.mxu0 %v73
    %1295 = vmatpush1.msra.mxu0 %v72
    %1296 = vmatprep.subr.mxu0 %v77
    %1297 = vmatpush1.msra.mxu0 %v76
    %1298 = vmatprep.subr.mxu0 %v81
    %1299 = vmatpush1.msra.mxu0 %v80
    %1300 = vmatprep.subr.mxu0 %v85
    %1301 = vmatpush1.msra.mxu0 %v84
    %1302 = vmatprep.subr.mxu0 %v89
    %1303 = vmatpush1.msra.mxu0 %v88
    %1304 = vmatprep.subr.mxu0 %v93
    %1305 = vmatpush1.msra.mxu0 %v92
    %1306 = vmatprep.subr.mxu0 %v97
    %1307 = vmatpush1.msra.mxu0 %v96
    %1308 = vmatprep.subr.mxu0 %v101
    %1309 = vmatpush1.msra.mxu0 %v100
    %1310 = vmatprep.subr.mxu0 %v105
    %1311 = vmatpush1.msra.mxu0 %v104
    %1312 = vmatprep.subr.mxu0 %v109
    %1313 = vmatpush1.msra.mxu0 %v108
    %1314 = vmatprep.subr.mxu0 %v113
    %1315 = vmatpush1.msra.mxu0 %v112
    %1316 = vmatprep.subr.mxu0 0.0
    %1317 = vmatpush1.msra.mxu0 0.0
    %1318 = vmatprep.subr.mxu0 0.0
    %1319 = vmatpush1.msra.mxu0 0.0
    %1320 = vmatprep.subr.mxu0 0.0
    %1321 = vmatpush1.msra.mxu0 0.0
    %1322 = vmatprep.subr.mxu0 0.0
    %1323 = vmatpush1.msra.mxu0 0.0
    %1324 = vmatprep.subr.mxu0 0.0
    %1325 = vmatpush1.msra.mxu0 0.0
    %1326 = vmatprep.subr.mxu0 0.0
    %1327 = vmatpush1.msra.mxu0 0.0
    %1328 = vmatprep.subr.mxu0 0.0
    %1329 = vmatpush1.msra.mxu0 0.0
    %1330 = vmatprep.subr.mxu0 0.0
    %1331 = vmatpush1.msra.mxu0 0.0
    %1332 = vmatprep.subr.mxu0 0.0
    %1333 = vmatpush1.msra.mxu0 0.0
    %1334 = vmatprep.subr.mxu0 0.0
    %1335 = vmatpush1.msra.mxu0 0.0
    %1336 = vmatprep.subr.mxu0 0.0
    %1337 = vmatpush1.msra.mxu0 0.0
    %1338 = vmatprep.subr.mxu0 0.0
    %1339 = vmatpush1.msra.mxu0 0.0
    %1340 = vmatprep.subr.mxu0 0.0
    %1341 = vmatpush1.msra.mxu0 0.0
    %1342 = vmatprep.subr.mxu0 0.0
    %1343 = vmatpush1.msra.mxu0 0.0
    %1344 = vmatprep.subr.mxu0 0.0
    %1345 = vmatpush1.msra.mxu0 0.0
    %1346 = vmatprep.subr.mxu0 0.0
    %1347 = vmatpush1.msra.mxu0 0.0
    %1348 = vmatprep.mubr.f32.mxu0 0.0
    %1349 = vmatmul.mubr.f32.gmra.mrb[0].mxu0 %v1268
    %v1350 = vpop.f32.mrb[0].mxu0
    %v1351 = vadd.f32 0.0, %v1350
    %v1352 = vpop.f32.mrb[0].mxu0
    %v1353 = vadd.f32 0.0, %v1352
    %1354 = vdwg.mxu0
    %1355 = vmatprep.subr.mxu0 %v55
    %1356 = vmatpush1.msra.mxu0 %v54
    %1357 = vmatprep.subr.mxu0 %v59
    %1358 = vmatpush1.msra.mxu0 %v58
    %1359 = vmatprep.subr.mxu0 %v63
    %1360 = vmatpush1.msra.mxu0 %v62
    %1361 = vmatprep.subr.mxu0 %v67
    %1362 = vmatpush1.msra.mxu0 %v66
    %1363 = vmatprep.subr.mxu0 %v71
    %1364 = vmatpush1.msra.mxu0 %v70
    %1365 = vmatprep.subr.mxu0 %v75
    %1366 = vmatpush1.msra.mxu0 %v74
    %1367 = vmatprep.subr.mxu0 %v79
    %1368 = vmatpush1.msra.mxu0 %v78
    %1369 = vmatprep.subr.mxu0 %v83
    %1370 = vmatpush1.msra.mxu0 %v82
    %1371 = vmatprep.subr.mxu0 %v87
    %1372 = vmatpush1.msra.mxu0 %v86
    %1373 = vmatprep.subr.mxu0 %v91
    %1374 = vmatpush1.msra.mxu0 %v90
    %1375 = vmatprep.subr.mxu0 %v95
    %1376 = vmatpush1.msra.mxu0 %v94
    %1377 = vmatprep.subr.mxu0 %v99
    %1378 = vmatpush1.msra.mxu0 %v98
    %1379 = vmatprep.subr.mxu0 %v103
    %1380 = vmatpush1.msra.mxu0 %v102
    %1381 = vmatprep.subr.mxu0 %v107
    %1382 = vmatpush1.msra.mxu0 %v106
    %1383 = vmatprep.subr.mxu0 %v111
    %1384 = vmatpush1.msra.mxu0 %v110
    %1385 = vmatprep.subr.mxu0 %v115
    %1386 = vmatpush1.msra.mxu0 %v114
    %1387 = vmatprep.subr.mxu0 0.0
    %1388 = vmatpush1.msra.mxu0 0.0
    %1389 = vmatprep.subr.mxu0 0.0
    %1390 = vmatpush1.msra.mxu0 0.0
    %1391 = vmatprep.subr.mxu0 0.0
    %1392 = vmatpush1.msra.mxu0 0.0
    %1393 = vmatprep.subr.mxu0 0.0
    %1394 = vmatpush1.msra.mxu0 0.0
    %1395 = vmatprep.subr.mxu0 0.0
    %1396 = vmatpush1.msra.mxu0 0.0
    %1397 = vmatprep.subr.mxu0 0.0
    %1398 = vmatpush1.msra.mxu0 0.0
    %1399 = vmatprep.subr.mxu0 0.0
    %1400 = vmatpush1.msra.mxu0 0.0
    %1401 = vmatprep.subr.mxu0 0.0
    %1402 = vmatpush1.msra.mxu0 0.0
    %1403 = vmatprep.subr.mxu0 0.0
    %1404 = vmatpush1.msra.mxu0 0.0
    %1405 = vmatprep.subr.mxu0 0.0
    %1406 = vmatpush1.msra.mxu0 0.0
    %1407 = vmatprep.subr.mxu0 0.0
    %1408 = vmatpush1.msra.mxu0 0.0
    %1409 = vmatprep.subr.mxu0 0.0
    %1410 = vmatpush1.msra.mxu0 0.0
    %1411 = vmatprep.subr.mxu0 0.0
    %1412 = vmatpush1.msra.mxu0 0.0
    %1413 = vmatprep.subr.mxu0 0.0
    %1414 = vmatpush1.msra.mxu0 0.0
    %1415 = vmatprep.subr.mxu0 0.0
    %1416 = vmatpush1.msra.mxu0 0.0
    %1417 = vmatprep.subr.mxu0 0.0
    %1418 = vmatpush1.msra.mxu0 0.0
    %1419 = vmatprep.mubr.f32.mxu0 0.0
    %1420 = vmatmul.mubr.f32.gmra.mrb[0].mxu0 %v1268
    %v1421 = vpop.f32.mrb[0].mxu0
    %v1422 = vadd.f32 0.0, %v1421
    %v1423 = vpop.f32.mrb[0].mxu0
    %v1424 = vadd.f32 0.0, %v1423
    %1425 = vdwg.mxu0
    %v1426 = vadd.f32 %v1280, %v1351
    %v1427 = vadd.f32 %v1281, %v1353
    %v1428 = vadd.f32 %v1282, %v1422
    %v1429 = vadd.f32 %v1283, %v1424
    %v1430 = vxor.u32 %v1426, 2147483648
    %v1431 = vxor.u32 %v1427, 2147483648
    %v1432 = vxor.u32 %v1428, 2147483648
    %v1433 = vmul.f32 %v1430, 1.442695
    %v1434 = vpow.pop %v1433
    %v1435 = vmul.f32 %v1431, 1.442695
    %v1436 = vpow.pop %v1435
    %v1437 = vmul.f32 %v1432, 1.442695
    %v1438 = vpow.pop %v1437
    %v1439 = vadd.f32 %v1434, 1.0
    %v1440 = vadd.f32 %v1436, 1.0
    %v1441 = vadd.f32 %v1438, 1.0
    %v1442 = vrcp.pop %v1439
    %v1443 = vmul.f32 1.0, %v1442
    %v1444 = vrcp.pop %v1440
    %v1445 = vmul.f32 1.0, %v1444
    %v1446 = vrcp.pop %v1441
    %v1447 = vmul.f32 1.0, %v1446
    %v1448 = vtanh.pop %v1429
    %v1449 = vmul.f32 %v1445, %v1266
    %v1450 = vmul.f32 %v1443, %v1448
    %v1451 = vadd.f32 %v1449, %v1450
    %v1452 = vtanh.pop %v1451
    %v1453 = vmul.f32 %v1447, %v1452
    %s1454 = scalar_lea.vmem %s0, 56
    %v1455 = vld [vmem:[%s1454] sm:$0xff]
    %1457 = vset.pattern.permute.xlu0 0
    %1458 = vperm.xlu0 %1457, %v1455
    %v1459 = vpop.permute.xlu0 %1458
    %v1461 = vmul.f32 %v1459, %v128
    %v1462 = vmul.f32 %v1459, %v132
    %v1463 = vmul.f32 %v1459, %v136
    %v1464 = vmul.f32 %v1459, %v140
    %v1465 = vadd.f32 %v1461, %v153
    %v1466 = vadd.f32 %v1462, %v157
    %v1467 = vadd.f32 %v1463, %v161
    %v1468 = vadd.f32 %v1464, %v165
    %1469 = vmatprep.subr.mxu0 %v53
    %1470 = vmatpush1.msra.mxu0 %v52
    %1471 = vmatprep.subr.mxu0 %v57
    %1472 = vmatpush1.msra.mxu0 %v56
    %1473 = vmatprep.subr.mxu0 %v61
    %1474 = vmatpush1.msra.mxu0 %v60
    %1475 = vmatprep.subr.mxu0 %v65
    %1476 = vmatpush1.msra.mxu0 %v64
    %1477 = vmatprep.subr.mxu0 %v69
    %1478 = vmatpush1.msra.mxu0 %v68
    %1479 = vmatprep.subr.mxu0 %v73
    %1480 = vmatpush1.msra.mxu0 %v72
    %1481 = vmatprep.subr.mxu0 %v77
    %1482 = vmatpush1.msra.mxu0 %v76
    %1483 = vmatprep.subr.mxu0 %v81
    %1484 = vmatpush1.msra.mxu0 %v80
    %1485 = vmatprep.subr.mxu0 %v85
    %1486 = vmatpush1.msra.mxu0 %v84
    %1487 = vmatprep.subr.mxu0 %v89
    %1488 = vmatpush1.msra.mxu0 %v88
    %1489 = vmatprep.subr.mxu0 %v93
    %1490 = vmatpush1.msra.mxu0 %v92
    %1491 = vmatprep.subr.mxu0 %v97
    %1492 = vmatpush1.msra.mxu0 %v96
    %1493 = vmatprep.subr.mxu0 %v101
    %1494 = vmatpush1.msra.mxu0 %v100
    %1495 = vmatprep.subr.mxu0 %v105
    %1496 = vmatpush1.msra.mxu0 %v104
    %1497 = vmatprep.subr.mxu0 %v109
    %1498 = vmatpush1.msra.mxu0 %v108
    %1499 = vmatprep.subr.mxu0 %v113
    %1500 = vmatpush1.msra.mxu0 %v112
    %1501 = vmatprep.subr.mxu0 0.0
    %1502 = vmatpush1.msra.mxu0 0.0
    %1503 = vmatprep.subr.mxu0 0.0
    %1504 = vmatpush1.msra.mxu0 0.0
    %1505 = vmatprep.subr.mxu0 0.0
    %1506 = vmatpush1.msra.mxu0 0.0
    %1507 = vmatprep.subr.mxu0 0.0
    %1508 = vmatpush1.msra.mxu0 0.0
    %1509 = vmatprep.subr.mxu0 0.0
    %1510 = vmatpush1.msra.mxu0 0.0
    %1511 = vmatprep.subr.mxu0 0.0
    %1512 = vmatpush1.msra.mxu0 0.0
    %1513 = vmatprep.subr.mxu0 0.0
    %1514 = vmatpush1.msra.mxu0 0.0
    %1515 = vmatprep.subr.mxu0 0.0
    %1516 = vmatpush1.msra.mxu0 0.0
    %1517 = vmatprep.subr.mxu0 0.0
    %1518 = vmatpush1.msra.mxu0 0.0
    %1519 = vmatprep.subr.mxu0 0.0
    %1520 = vmatpush1.msra.mxu0 0.0
    %1521 = vmatprep.subr.mxu0 0.0
    %1522 = vmatpush1.msra.mxu0 0.0
    %1523 = vmatprep.subr.mxu0 0.0
    %1524 = vmatpush1.msra.mxu0 0.0
    %1525 = vmatprep.subr.mxu0 0.0
    %1526 = vmatpush1.msra.mxu0 0.0
    %1527 = vmatprep.subr.mxu0 0.0
    %1528 = vmatpush1.msra.mxu0 0.0
    %1529 = vmatprep.subr.mxu0 0.0
    %1530 = vmatpush1.msra.mxu0 0.0
    %1531 = vmatprep.subr.mxu0 0.0
    %1532 = vmatpush1.msra.mxu0 0.0
    %1533 = vmatprep.mubr.f32.mxu0 0.0
    %1534 = vmatmul.mubr.f32.gmra.mrb[0].mxu0 %v1453
    %v1535 = vpop.f32.mrb[0].mxu0
    %v1536 = vadd.f32 0.0, %v1535
    %v1537 = vpop.f32.mrb[0].mxu0
    %v1538 = vadd.f32 0.0, %v1537
    %1539 = vdwg.mxu0
    %1540 = vmatprep.subr.mxu0 %v55
    %1541 = vmatpush1.msra.mxu0 %v54
    %1542 = vmatprep.subr.mxu0 %v59
    %1543 = vmatpush1.msra.mxu0 %v58
    %1544 = vmatprep.subr.mxu0 %v63
    %1545 = vmatpush1.msra.mxu0 %v62
    %1546 = vmatprep.subr.mxu0 %v67
    %1547 = vmatpush1.msra.mxu0 %v66
    %1548 = vmatprep.subr.mxu0 %v71
    %1549 = vmatpush1.msra.mxu0 %v70
    %1550 = vmatprep.subr.mxu0 %v75
    %1551 = vmatpush1.msra.mxu0 %v74
    %1552 = vmatprep.subr.mxu0 %v79
    %1553 = vmatpush1.msra.mxu0 %v78
    %1554 = vmatprep.subr.mxu0 %v83
    %1555 = vmatpush1.msra.mxu0 %v82
    %1556 = vmatprep.subr.mxu0 %v87
    %1557 = vmatpush1.msra.mxu0 %v86
    %1558 = vmatprep.subr.mxu0 %v91
    %1559 = vmatpush1.msra.mxu0 %v90
    %1560 = vmatprep.subr.mxu0 %v95
    %1561 = vmatpush1.msra.mxu0 %v94
    %1562 = vmatprep.subr.mxu0 %v99
    %1563 = vmatpush1.msra.mxu0 %v98
    %1564 = vmatprep.subr.mxu0 %v103
    %1565 = vmatpush1.msra.mxu0 %v102
    %1566 = vmatprep.subr.mxu0 %v107
    %1567 = vmatpush1.msra.mxu0 %v106
    %1568 = vmatprep.subr.mxu0 %v111
    %1569 = vmatpush1.msra.mxu0 %v110
    %1570 = vmatprep.subr.mxu0 %v115
    %1571 = vmatpush1.msra.mxu0 %v114
    %1572 = vmatprep.subr.mxu0 0.0
    %1573 = vmatpush1.msra.mxu0 0.0
    %1574 = vmatprep.subr.mxu0 0.0
    %1575 = vmatpush1.msra.mxu0 0.0
    %1576 = vmatprep.subr.mxu0 0.0
    %1577 = vmatpush1.msra.mxu0 0.0
    %1578 = vmatprep.subr.mxu0 0.0
    %1579 = vmatpush1.msra.mxu0 0.0
    %1580 = vmatprep.subr.mxu0 0.0
    %1581 = vmatpush1.msra.mxu0 0.0
    %1582 = vmatprep.subr.mxu0 0.0
    %1583 = vmatpush1.msra.mxu0 0.0
    %1584 = vmatprep.subr.mxu0 0.0
    %1585 = vmatpush1.msra.mxu0 0.0
    %1586 = vmatprep.subr.mxu0 0.0
    %1587 = vmatpush1.msra.mxu0 0.0
    %1588 = vmatprep.subr.mxu0 0.0
    %1589 = vmatpush1.msra.mxu0 0.0
    %1590 = vmatprep.subr.mxu0 0.0
    %1591 = vmatpush1.msra.mxu0 0.0
    %1592 = vmatprep.subr.mxu0 0.0
    %1593 = vmatpush1.msra.mxu0 0.0
    %1594 = vmatprep.subr.mxu0 0.0
    %1595 = vmatpush1.msra.mxu0 0.0
    %1596 = vmatprep.subr.mxu0 0.0
    %1597 = vmatpush1.msra.mxu0 0.0
    %1598 = vmatprep.subr.mxu0 0.0
    %1599 = vmatpush1.msra.mxu0 0.0
    %1600 = vmatprep.subr.mxu0 0.0
    %1601 = vmatpush1.msra.mxu0 0.0
    %1602 = vmatprep.subr.mxu0 0.0
    %1603 = vmatpush1.msra.mxu0 0.0
    %1604 = vmatprep.mubr.f32.mxu0 0.0
    %1605 = vmatmul.mubr.f32.gmra.mrb[0].mxu0 %v1453
    %v1606 = vpop.f32.mrb[0].mxu0
    %v1607 = vadd.f32 0.0, %v1606
    %v1608 = vpop.f32.mrb[0].mxu0
    %v1609 = vadd.f32 0.0, %v1608
    %1610 = vdwg.mxu0
    %v1611 = vadd.f32 %v1465, %v1536
    %v1612 = vadd.f32 %v1466, %v1538
    %v1613 = vadd.f32 %v1467, %v1607
    %v1614 = vadd.f32 %v1468, %v1609
    %v1615 = vxor.u32 %v1611, 2147483648
    %v1616 = vxor.u32 %v1612, 2147483648
    %v1617 = vxor.u32 %v1613, 2147483648
    %v1618 = vmul.f32 %v1615, 1.442695
    %v1619 = vpow.pop %v1618
    %v1620 = vmul.f32 %v1616, 1.442695
    %v1621 = vpow.pop %v1620
    %v1622 = vmul.f32 %v1617, 1.442695
    %v1623 = vpow.pop %v1622
    %v1624 = vadd.f32 %v1619, 1.0
    %v1625 = vadd.f32 %v1621, 1.0
    %v1626 = vadd.f32 %v1623, 1.0
    %v1627 = vrcp.pop %v1624
    %v1628 = vmul.f32 1.0, %v1627
    %v1629 = vrcp.pop %v1625
    %v1630 = vmul.f32 1.0, %v1629
    %v1631 = vrcp.pop %v1626
    %v1632 = vmul.f32 1.0, %v1631
    %v1633 = vtanh.pop %v1614
    %v1634 = vmul.f32 %v1630, %v1451
    %v1635 = vmul.f32 %v1628, %v1633
    %v1636 = vadd.f32 %v1634, %v1635
    %v1637 = vtanh.pop %v1636
    %v1638 = vmul.f32 %v1632, %v1637
    %v1639 = vld [vmem:[#allocation5] sm:$0xff]
    %v1640 = vld [vmem:[#allocation5 + $0x8] sm:$0xff]
    %v1641 = vld [vmem:[#allocation5 + $0x10] sm:$0xff]
    %v1642 = vld [vmem:[#allocation5 + $0x18] sm:$0xff]
    %v1643 = vld [vmem:[#allocation5 + $0x20] sm:$0xff]
    %v1644 = vld [vmem:[#allocation5 + $0x28] sm:$0xff]
    %v1645 = vld [vmem:[#allocation5 + $0x30] sm:$0xff]
    %v1646 = vld [vmem:[#allocation5 + $0x38] sm:$0xff]
    %v1647 = vld [vmem:[#allocation5 + $0x40] sm:$0xff]
    %v1648 = vld [vmem:[#allocation5 + $0x48] sm:$0xff]
    %v1649 = vld [vmem:[#allocation5 + $0x50] sm:$0xff]
    %v1650 = vld [vmem:[#allocation5 + $0x58] sm:$0xff]
    %v1651 = vld [vmem:[#allocation5 + $0x60] sm:$0xff]
    %v1652 = vld [vmem:[#allocation5 + $0x68] sm:$0xff]
    %v1653 = vld [vmem:[#allocation5 + $0x70] sm:$0xff]
    %v1654 = vld [vmem:[#allocation5 + $0x78] sm:$0xff]
    %v1655 = vld [vmem:[%s5] sm:$0x1]
    %v1657 = vlaneseq
    %v1658 = vshrl.u32 %v1657, 7
    %v1659 = vsub.s32 0, %v1658
    %v1660 = vrot.slane %v1655, %v1659
    %1662 = vmatprep.subr.mxu0 0.0
    %1663 = vmatpush1.msra.mxu0 %v1639
    %1664 = vmatprep.subr.mxu0 0.0
    %1665 = vmatpush1.msra.mxu0 %v1640
    %1666 = vmatprep.subr.mxu0 0.0
    %1667 = vmatpush1.msra.mxu0 %v1641
    %1668 = vmatprep.subr.mxu0 0.0
    %1669 = vmatpush1.msra.mxu0 %v1642
    %1670 = vmatprep.subr.mxu0 0.0
    %1671 = vmatpush1.msra.mxu0 %v1643
    %1672 = vmatprep.subr.mxu0 0.0
    %1673 = vmatpush1.msra.mxu0 %v1644
    %1674 = vmatprep.subr.mxu0 0.0
    %1675 = vmatpush1.msra.mxu0 %v1645
    %1676 = vmatprep.subr.mxu0 0.0
    %1677 = vmatpush1.msra.mxu0 %v1646
    %1678 = vmatprep.subr.mxu0 0.0
    %1679 = vmatpush1.msra.mxu0 %v1647
    %1680 = vmatprep.subr.mxu0 0.0
    %1681 = vmatpush1.msra.mxu0 %v1648
    %1682 = vmatprep.subr.mxu0 0.0
    %1683 = vmatpush1.msra.mxu0 %v1649
    %1684 = vmatprep.subr.mxu0 0.0
    %1685 = vmatpush1.msra.mxu0 %v1650
    %1686 = vmatprep.subr.mxu0 0.0
    %1687 = vmatpush1.msra.mxu0 %v1651
    %1688 = vmatprep.subr.mxu0 0.0
    %1689 = vmatpush1.msra.mxu0 %v1652
    %1690 = vmatprep.subr.mxu0 0.0
    %1691 = vmatpush1.msra.mxu0 %v1653
    %1692 = vmatprep.subr.mxu0 0.0
    %1693 = vmatpush1.msra.mxu0 %v1654
    %1694 = vmatprep.subr.mxu0 0.0
    %1695 = vmatpush1.msra.mxu0 0.0
    %1696 = vmatprep.subr.mxu0 0.0
    %1697 = vmatpush1.msra.mxu0 0.0
    %1698 = vmatprep.subr.mxu0 0.0
    %1699 = vmatpush1.msra.mxu0 0.0
    %1700 = vmatprep.subr.mxu0 0.0
    %1701 = vmatpush1.msra.mxu0 0.0
    %1702 = vmatprep.subr.mxu0 0.0
    %1703 = vmatpush1.msra.mxu0 0.0
    %1704 = vmatprep.subr.mxu0 0.0
    %1705 = vmatpush1.msra.mxu0 0.0
    %1706 = vmatprep.subr.mxu0 0.0
    %1707 = vmatpush1.msra.mxu0 0.0
    %1708 = vmatprep.subr.mxu0 0.0
    %1709 = vmatpush1.msra.mxu0 0.0
    %1710 = vmatprep.subr.mxu0 0.0
    %1711 = vmatpush1.msra.mxu0 0.0
    %1712 = vmatprep.subr.mxu0 0.0
    %1713 = vmatpush1.msra.mxu0 0.0
    %1714 = vmatprep.subr.mxu0 0.0
    %1715 = vmatpush1.msra.mxu0 0.0
    %1716 = vmatprep.subr.mxu0 0.0
    %1717 = vmatpush1.msra.mxu0 0.0
    %1718 = vmatprep.subr.mxu0 0.0
    %1719 = vmatpush1.msra.mxu0 0.0
    %1720 = vmatprep.subr.mxu0 0.0
    %1721 = vmatpush1.msra.mxu0 0.0
    %1722 = vmatprep.subr.mxu0 0.0
    %1723 = vmatpush1.msra.mxu0 0.0
    %1724 = vmatprep.subr.mxu0 0.0
    %1725 = vmatpush1.msra.mxu0 0.0
    %1726 = vmatprep.mubr.f32.mxu0 0.0
    %1727 = vmatmul.mubr.f32.gmra.mrb[0].mxu0 %v1638
    %v1728 = vpop.f32.mrb[0].mxu0
    %v1729 = vadd.f32 %v1660, %v1728
    %v1730 = vpop.f32.mrb[0].mxu0
    %1731 = vdwg.mxu0
    %1732 = vst [vmem:[#allocation7] sm:$0xff] %v1729
    // Predicated region
    $region34: #{tpu_custom_call.1} parent=1 // pred_check
      _
    $region35: #{tpu_custom_call.1} parent=1 // pred_check_branch
      %1734 = sbr.rel (0) target = $region37
    $region36: #{tpu_custom_call.1} parent=1 // pred_region
      %s1736 = ssub.s32 128, 128
      %1737 = vsyncadd [#allocation4], %s1736
      %s1739 = sshll.u32 [#allocation7], 4
      %s1740 = int_to_ptr.vmem [resolvable:$true] %s1739
      %1742 = dma.vmem_to_hbm [thread:$0]  %s1740, 128, %s6, [#allocation4]
    $region37: #{tpu_custom_call.1} parent=1 // pred_fallthru
      _
    // Predicated region
    $region38: #{tpu_custom_call.1} parent=1 // pred_check
      _
    $region39: #{tpu_custom_call.1} parent=1 // pred_check_branch
      %1744 = sbr.rel (0) target = $region41
    $region40: #{tpu_custom_call.1} parent=1 // pred_region
      %1745 = dma.done [#allocation4], 128
    $region41: #{tpu_custom_call.1} parent=1 // pred_fallthru
      _
    %1746 = vsyncpa [#allocation3], 1
    %1747 = vsyncpa [#allocation6], 1
    %1748 = vsyncpa [#allocation4], 1

</llo_original>
